<compile_context>
chip_gen: v7x
topology: tpu7x:2x2x1
jax: 0.10.0
libtpu: 0.0.40
codegen_flags: <defaults>
</compile_context>

<pallas_src>
import math

import jax
import jax.numpy as jnp
from jax.experimental import pallas as pl
from jax.experimental.pallas import tpu as pltpu


# ---------------------------------------------------------------------------
# Kernel: full encoder+decoder MLP on one lane-packed batch tile.
# ---------------------------------------------------------------------------
def _autoencoder_kernel(x_ref,
                        w1_ref, b1_ref,
                        w2_ref, b2_ref,
                        w3_ref, b3_ref,
                        w4_ref, b4_ref,
                        o_ref):
    cdt = w1_ref.dtype                       # MXU streaming dtype (bf16 default)
    x = x_ref[...].astype(cdt)               # in-kernel cast (no wrapper pass)

    # encoder: Linear(input, hidden) -> ReLU -> Linear(hidden, zipped)
    h = jnp.dot(x, w1_ref[...], preferred_element_type=jnp.float32) + b1_ref[...]
    h = jnp.maximum(h, 0.0).astype(cdt)      # ReLU on the f32 accumulator
    z = jnp.dot(h, w2_ref[...], preferred_element_type=jnp.float32) + b2_ref[...]
    z = z.astype(cdt)

    # decoder: Linear(zipped, hidden) -> ReLU -> Linear(hidden, input)
    d = jnp.dot(z, w3_ref[...], preferred_element_type=jnp.float32) + b3_ref[...]
    d = jnp.maximum(d, 0.0).astype(cdt)
    y = jnp.dot(d, w4_ref[...], preferred_element_type=jnp.float32) + b4_ref[...]

    o_ref[...] = y.astype(o_ref.dtype)


# ---------------------------------------------------------------------------
# One-time parameter packing (PyTorch [out,in] -> lane-dense block-diagonal).
# ---------------------------------------------------------------------------
def prepare_params(params, *, compute_dtype=jnp.bfloat16, lane_pack=None):
    """Transpose to [in,out], replicate block-diagonally `lane_pack` times so
    `lane_pack` batch rows pack into one 128-lane row, cast to compute_dtype
    (biases stay f32: added to the f32 MXU accumulator)."""
    d_in = params["w1"].shape[1]
    hidden = params["w1"].shape[0]
    zipped = params["w2"].shape[0]

    if lane_pack is None:
        lane_pack = 128 // d_in if (d_in < 128 and 128 % d_in == 0) else 1
    p = lane_pack

    def pack_w(w_torch):                      # torch [out, in] -> [p*in, p*out]
        wt = w_torch.T                        # [in, out]
        eye = jnp.eye(p, dtype=wt.dtype)
        big = jnp.einsum("ab,io->aibo", eye, wt)
        big = big.reshape(p * wt.shape[0], p * wt.shape[1])
        return big.astype(compute_dtype)

    def pack_b(b):                            # [out] -> [1, p*out] (tiled)
        return jnp.tile(b.reshape(1, -1), (1, p)).astype(jnp.float32)

    return dict(
        w1=pack_w(params["w1"]), b1=pack_b(params["b1"]),
        w2=pack_w(params["w2"]), b2=pack_b(params["b2"]),
        w3=pack_w(params["w3"]), b3=pack_b(params["b3"]),
        w4=pack_w(params["w4"]), b4=pack_b(params["b4"]),
        d_in=d_in, hidden=hidden, zipped=zipped,
        lane_pack=p, compute_dtype=compute_dtype,
    )


# ---------------------------------------------------------------------------
# Forward wrapper.
# ---------------------------------------------------------------------------
def autoencoder_forward(x, prepared, *, batch_tile=None, out_dtype=None,
                        unpad=True):
    """Pallas forward pass of BaseAutoEncoder.  x: [N, input]."""
    n, d_in = x.shape
    assert d_in == prepared["d_in"]
    p = prepared["lane_pack"]
    cdt = prepared["compute_dtype"]
    hid, zipd = prepared["hidden"], prepared["zipped"]
    if out_dtype is None:
        out_dtype = x.dtype

    gran = 8 * p                     # packing granule (sublane * lane_pack)
    lanes = p * d_in
    in_isz = jnp.dtype(x.dtype).itemsize
    out_isz = jnp.dtype(out_dtype).itemsize
    cdt_isz = jnp.dtype(cdt).itemsize

    # Pad only to the packing granule (<= gran-1 rows). The ragged last grid
    # step is handled by Pallas boundary masking — never a full-tile pad pass.
    n_pad = pl.cdiv(n, gran) * gran
    xs = x if n_pad == n else jnp.pad(x, ((0, n_pad - n), (0, 0)))
    # Lane-dense relayout: [n_pad, d_in] -> [n_pad//p, p*d_in] is a
    # bit-identical row-major reshape (layout plumbing only, no compute).
    xs = xs.reshape(n_pad // p, lanes)
    rows_p = n_pad // p

    w1, b1 = prepared["w1"], prepared["b1"]
    w2, b2 = prepared["w2"], prepared["b2"]
    w3, b3 = prepared["w3"], prepared["b3"]
    w4, b4 = prepared["w4"], prepared["b4"]
    weight_bytes = sum(int(a.size) * a.dtype.itemsize
                       for a in (w1, b1, w2, b2, w3, b3, w4, b4))

    def footprint(bt):               # live-VMEM estimate for a batch tile
        tp = bt // p
        io = tp * lanes * 2 * (in_isz + out_isz)          # x/out, 2 buffers each
        act = tp * p * (2 * hid + zipd) * (4 + cdt_isz)   # f32 acc + cdt h/z/d
        return io + act + 2 * weight_bytes

    if batch_tile is None:
        # ~2 MiB of streamed x per grid step (amortizes the ~0.35us/step fixed
        # overhead at 1.3-3.2 TB/s HBM), bounded by a ~24 MiB live-VMEM budget
        # so it fits v7x's 64 MiB physical VMEM with headroom.
        bt = max(gran, (2 << 20) // max(1, d_in * in_isz))
        bt = min(bt, n_pad)
        bt = max(gran, (bt // gran) * gran)
        while bt > gran and footprint(bt) > (24 << 20):
            bt = max(gran, ((bt // 2) // gran) * gran)
        batch_tile = bt
    assert batch_tile % gran == 0, "batch_tile must be a multiple of 8*lane_pack"
    tile_p = batch_tile // p
    grid = (pl.cdiv(rows_p, tile_p),)

    vmem_limit = int(min(max(32 << 20, footprint(batch_tile) * 3 // 2), 60 << 20))

    # Useful FLOPs only (the p-way block-diagonal replication is zero work);
    # bytes are exactly what the kernel streams (no wrapper passes remain).
    flops = 2 * n_pad * (d_in * hid + hid * zipd + zipd * hid + hid * d_in)
    bytes_accessed = n_pad * d_in * (in_isz + out_isz) + weight_bytes

    def make_call(single_buffer_weights):
        def wspec(shape):
            if single_buffer_weights:
                # grid-invariant blocks: fetched exactly once -> one buffer
                return pl.BlockSpec(shape, lambda i: (0, 0),
                                    pipeline_mode=pl.Buffered(1))
            return pl.BlockSpec(shape, lambda i: (0, 0))

        return pl.pallas_call(
            _autoencoder_kernel,
            out_shape=jax.ShapeDtypeStruct((rows_p, lanes), out_dtype),
            grid_spec=pltpu.PrefetchScalarGridSpec(
                num_scalar_prefetch=0,
                grid=grid,
                in_specs=[
                    pl.BlockSpec((tile_p, lanes), lambda i: (i, 0)),   # x tile
                    wspec(w1.shape), wspec(b1.shape),
                    wspec(w2.shape), wspec(b2.shape),
                    wspec(w3.shape), wspec(b3.shape),
                    wspec(w4.shape), wspec(b4.shape),
                ],
                out_specs=pl.BlockSpec((tile_p, lanes), lambda i: (i, 0)),
            ),
            # TODO(synk): confirm in an xprof trace that the batch axis shards
            # across v7x's 2 TensorCores; if not, switch to pltpu.CORE_PARALLEL.
            compiler_params=pltpu.CompilerParams(
                dimension_semantics=("parallel",),
                vmem_limit_bytes=vmem_limit),
            cost_estimate=pl.CostEstimate(
                flops=int(flops), transcendentals=0,
                bytes_accessed=int(bytes_accessed)),
        )

    args = (xs, w1, b1, w2, b2, w3, b3, w4, b4)
    try:
        out = make_call(True)(*args)
    except Exception:
        # Older JAX without BlockSpec(pipeline_mode=...): double-buffer weights.
        out = make_call(False)(*args)

    out = out.reshape(n_pad, d_in)            # bit-identical row-major reshape
    return out[:n] if (unpad and n_pad != n) else out


# ---------------------------------------------------------------------------
# Deterministic PyTorch-style init + pure-JAX reference.
# ---------------------------------------------------------------------------
def init_params(key, d_in, hidden, zipped):
    """U(-1/sqrt(fan_in), 1/sqrt(fan_in)) like torch.nn.Linear default."""
    def linear(key, out_f, in_f):
        kw, kb = jax.random.split(key)
        bound = 1.0 / math.sqrt(in_f)
        w = jax.random.uniform(kw, (out_f, in_f), jnp.float32, -bound, bound)
        b = jax.random.uniform(kb, (out_f,), jnp.float32, -bound, bound)
        return w, b

    k1, k2, k3, k4 = jax.random.split(key, 4)
    w1, b1 = linear(k1, hidden, d_in)    # encoder Linear(input, hidden)
    w2, b2 = linear(k2, zipped, hidden)  # encoder Linear(hidden, zipped)
    w3, b3 = linear(k3, hidden, zipped)  # decoder Linear(zipped, hidden)
    w4, b4 = linear(k4, d_in, hidden)    # decoder Linear(hidden, input)
    return dict(w1=w1, b1=b1, w2=w2, b2=b2, w3=w3, b3=b3, w4=w4, b4=b4)


def reference_forward(x, p):
    mm = lambda a, b: jnp.dot(a, b, precision=jax.lax.Precision.HIGHEST)
    h = jnp.maximum(mm(x, p["w1"].T) + p["b1"], 0.0)
    z = mm(h, p["w2"].T) + p["b2"]
    d = jnp.maximum(mm(z, p["w3"].T) + p["b3"], 0.0)
    return mm(d, p["w4"].T) + p["b4"]


if __name__ == "__main__":
    # Shapes consistent with the module: BaseAutoEncoder(16, 32, 8)
    d_in, hidden, zipped = 16, 32, 8
    batch = 200                      # ragged on purpose (exercises granule pad)

    key = jax.random.PRNGKey(0)
    kx, kp = jax.random.split(key)
    x = jax.random.normal(kx, (batch, d_in), dtype=jnp.float32)
    params = init_params(kp, d_in, hidden, zipped)
    y_ref = reference_forward(x, params)

    # 1) f32 weights path with a small batch_tile (several grid steps):
    #    validates the lane-packing / block-diagonal math against the module.
    prep_f32 = prepare_params(params, compute_dtype=jnp.float32)
    y_f32 = jax.block_until_ready(autoencoder_forward(x, prep_f32, batch_tile=64))
    assert y_f32.shape == (batch, d_in)
    assert jnp.allclose(y_f32, y_ref, atol=2e-2, rtol=2e-2), "f32 path mismatch"

    # 2) default path: bf16 weights/MXU (f32 accumulate), f32 I/O, auto tile.
    prep = prepare_params(params)
    y_def = jax.block_until_ready(autoencoder_forward(x, prep))
    assert y_def.shape == (batch, d_in)
    assert jnp.allclose(y_def, y_ref, atol=5e-2, rtol=5e-2), "bf16-weight mismatch"

    # 3) fully bf16-streamed path (x and y bf16): halves HBM traffic end to end.
    y_bf16 = jax.block_until_ready(
        autoencoder_forward(x.astype(jnp.bfloat16), prep, batch_tile=64))
    assert y_bf16.dtype == jnp.bfloat16
    assert jnp.allclose(y_bf16.astype(jnp.float32), y_ref, atol=1e-1, rtol=1e-1), \
        "bf16 streaming mismatch"

    # fit_step equivalent (MSE loss) — trivial reduction kept in plain JAX glue.
    loss = jnp.mean((y_def - x) ** 2)
    jax.block_until_ready(loss)

    print("KERNEL_OK")
</pallas_src>

<mosaic_0001>
module attributes {stable_mosaic.version = 11 : i64} {
  func.func @_autoencoder_kernel(%arg0: i32, %arg1: memref<8x128xf32, #tpu.memory_space<vmem>>, %arg2: memref<128x256xf32, #tpu.memory_space<vmem>>, %arg3: memref<1x256xf32, #tpu.memory_space<vmem>>, %arg4: memref<256x64xf32, #tpu.memory_space<vmem>>, %arg5: memref<1x64xf32, #tpu.memory_space<vmem>>, %arg6: memref<64x256xf32, #tpu.memory_space<vmem>>, %arg7: memref<1x256xf32, #tpu.memory_space<vmem>>, %arg8: memref<256x128xf32, #tpu.memory_space<vmem>>, %arg9: memref<1x128xf32, #tpu.memory_space<vmem>>, %arg10: memref<8x128xf32, #tpu.memory_space<vmem>>) attributes {dimension_semantics = [#tpu.dimension_semantics<parallel>], iteration_bounds = array<i64: 4>, scalar_prefetch = 0 : i64, scratch_operands = 0 : i64, tpu.core_type = #tpu.core_type<tc>, window_params = [{transform_indices = @transform_0, window_bounds = array<i64: 8, 128>}, {pipeline_mode = #tpu.pipeline_mode<synchronous>, transform_indices = @transform_1, window_bounds = array<i64: 128, 256>}, {pipeline_mode = #tpu.pipeline_mode<synchronous>, transform_indices = @transform_2, window_bounds = array<i64: 1, 256>}, {pipeline_mode = #tpu.pipeline_mode<synchronous>, transform_indices = @transform_3, window_bounds = array<i64: 256, 64>}, {pipeline_mode = #tpu.pipeline_mode<synchronous>, transform_indices = @transform_4, window_bounds = array<i64: 1, 64>}, {pipeline_mode = #tpu.pipeline_mode<synchronous>, transform_indices = @transform_5, window_bounds = array<i64: 64, 256>}, {pipeline_mode = #tpu.pipeline_mode<synchronous>, transform_indices = @transform_6, window_bounds = array<i64: 1, 256>}, {pipeline_mode = #tpu.pipeline_mode<synchronous>, transform_indices = @transform_7, window_bounds = array<i64: 256, 128>}, {pipeline_mode = #tpu.pipeline_mode<synchronous>, transform_indices = @transform_8, window_bounds = array<i64: 1, 128>}, {transform_indices = @transform_9, window_bounds = array<i64: 8, 128>}]} {
    %c0 = arith.constant 0 : index
    %c0_0 = arith.constant 0 : index
    %0 = vector.load %arg1[%c0, %c0_0] : memref<8x128xf32, #tpu.memory_space<vmem>>, vector<8x128xf32>
    %c0_1 = arith.constant 0 : index
    %c0_2 = arith.constant 0 : index
    %1 = vector.load %arg2[%c0_1, %c0_2] : memref<128x256xf32, #tpu.memory_space<vmem>>, vector<128x256xf32>
    %cst = arith.constant dense<0.000000e+00> : vector<8x256xf32>
    %2 = tpu.matmul %0, %1, %cst {dimension_numbers = #tpu.dot_dimension_numbers<[1], [0], [0], [1], [0, 0, 1, 1], [], []>} : vector<8x128xf32>, vector<128x256xf32>, vector<8x256xf32> -> vector<8x256xf32>
    %c0_3 = arith.constant 0 : index
    %c0_4 = arith.constant 0 : index
    %3 = vector.load %arg3[%c0_3, %c0_4] : memref<1x256xf32, #tpu.memory_space<vmem>>, vector<1x256xf32>
    %4 = vector.broadcast %3 : vector<1x256xf32> to vector<8x256xf32>
    %5 = arith.addf %2, %4 : vector<8x256xf32>
    %cst_5 = arith.constant 0.000000e+00 : f32
    %6 = vector.broadcast %cst_5 : f32 to vector<8x256xf32>
    %7 = arith.maximumf %5, %6 : vector<8x256xf32>
    %c0_6 = arith.constant 0 : index
    %c0_7 = arith.constant 0 : index
    %8 = vector.load %arg4[%c0_6, %c0_7] : memref<256x64xf32, #tpu.memory_space<vmem>>, vector<256x64xf32>
    %cst_8 = arith.constant dense<0.000000e+00> : vector<8x64xf32>
    %9 = tpu.matmul %7, %8, %cst_8 {dimension_numbers = #tpu.dot_dimension_numbers<[1], [0], [0], [1], [0, 0, 1, 1], [], []>} : vector<8x256xf32>, vector<256x64xf32>, vector<8x64xf32> -> vector<8x64xf32>
    %c0_9 = arith.constant 0 : index
    %c0_10 = arith.constant 0 : index
    %10 = vector.load %arg5[%c0_9, %c0_10] : memref<1x64xf32, #tpu.memory_space<vmem>>, vector<1x64xf32>
    %11 = vector.broadcast %10 : vector<1x64xf32> to vector<8x64xf32>
    %12 = arith.addf %9, %11 : vector<8x64xf32>
    %c0_11 = arith.constant 0 : index
    %c0_12 = arith.constant 0 : index
    %13 = vector.load %arg6[%c0_11, %c0_12] : memref<64x256xf32, #tpu.memory_space<vmem>>, vector<64x256xf32>
    %cst_13 = arith.constant dense<0.000000e+00> : vector<8x256xf32>
    %14 = tpu.matmul %12, %13, %cst_13 {dimension_numbers = #tpu.dot_dimension_numbers<[1], [0], [0], [1], [0, 0, 1, 1], [], []>} : vector<8x64xf32>, vector<64x256xf32>, vector<8x256xf32> -> vector<8x256xf32>
    %c0_14 = arith.constant 0 : index
    %c0_15 = arith.constant 0 : index
    %15 = vector.load %arg7[%c0_14, %c0_15] : memref<1x256xf32, #tpu.memory_space<vmem>>, vector<1x256xf32>
    %16 = vector.broadcast %15 : vector<1x256xf32> to vector<8x256xf32>
    %17 = arith.addf %14, %16 : vector<8x256xf32>
    %cst_16 = arith.constant 0.000000e+00 : f32
    %18 = vector.broadcast %cst_16 : f32 to vector<8x256xf32>
    %19 = arith.maximumf %17, %18 : vector<8x256xf32>
    %c0_17 = arith.constant 0 : index
    %c0_18 = arith.constant 0 : index
    %20 = vector.load %arg8[%c0_17, %c0_18] : memref<256x128xf32, #tpu.memory_space<vmem>>, vector<256x128xf32>
    %cst_19 = arith.constant dense<0.000000e+00> : vector<8x128xf32>
    %21 = tpu.matmul %19, %20, %cst_19 {dimension_numbers = #tpu.dot_dimension_numbers<[1], [0], [0], [1], [0, 0, 1, 1], [], []>} : vector<8x256xf32>, vector<256x128xf32>, vector<8x128xf32> -> vector<8x128xf32>
    %c0_20 = arith.constant 0 : index
    %c0_21 = arith.constant 0 : index
    %22 = vector.load %arg9[%c0_20, %c0_21] : memref<1x128xf32, #tpu.memory_space<vmem>>, vector<1x128xf32>
    %23 = vector.broadcast %22 : vector<1x128xf32> to vector<8x128xf32>
    %24 = arith.addf %21, %23 : vector<8x128xf32>
    %c0_22 = arith.constant 0 : index
    %c0_23 = arith.constant 0 : index
    %25 = vector.load %arg10[%c0_22, %c0_23] : memref<8x128xf32, #tpu.memory_space<vmem>>, vector<8x128xf32>
    tpu.vector_store %arg10[%c0_22, %c0_23], %24 {strides = array<i32>} : memref<8x128xf32, #tpu.memory_space<vmem>>, vector<8x128xf32>,
    return
  }
  func.func @transform_0(%arg0: i32) -> (i32, i32) {
    %c0_i32 = arith.constant 0 : i32
    %c0_i32_0 = arith.constant 0 : i32
    return %arg0, %c0_i32 : i32, i32
  }
  func.func @transform_1(%arg0: i32) -> (i32, i32) {
    %c0_i32 = arith.constant 0 : i32
    %c0_i32_0 = arith.constant 0 : i32
    %c0_i32_1 = arith.constant 0 : i32
    return %c0_i32, %c0_i32_0 : i32, i32
  }
  func.func @transform_2(%arg0: i32) -> (i32, i32) {
    %c0_i32 = arith.constant 0 : i32
    %c0_i32_0 = arith.constant 0 : i32
    %c0_i32_1 = arith.constant 0 : i32
    return %c0_i32, %c0_i32_0 : i32, i32
  }
  func.func @transform_3(%arg0: i32) -> (i32, i32) {
    %c0_i32 = arith.constant 0 : i32
    %c0_i32_0 = arith.constant 0 : i32
    %c0_i32_1 = arith.constant 0 : i32
    return %c0_i32, %c0_i32_0 : i32, i32
  }
  func.func @transform_4(%arg0: i32) -> (i32, i32) {
    %c0_i32 = arith.constant 0 : i32
    %c0_i32_0 = arith.constant 0 : i32
    %c0_i32_1 = arith.constant 0 : i32
    return %c0_i32, %c0_i32_0 : i32, i32
  }
  func.func @transform_5(%arg0: i32) -> (i32, i32) {
    %c0_i32 = arith.constant 0 : i32
    %c0_i32_0 = arith.constant 0 : i32
    %c0_i32_1 = arith.constant 0 : i32
    return %c0_i32, %c0_i32_0 : i32, i32
  }
  func.func @transform_6(%arg0: i32) -> (i32, i32) {
    %c0_i32 = arith.constant 0 : i32
    %c0_i32_0 = arith.constant 0 : i32
    %c0_i32_1 = arith.constant 0 : i32
    return %c0_i32, %c0_i32_0 : i32, i32
  }
  func.func @transform_7(%arg0: i32) -> (i32, i32) {
    %c0_i32 = arith.constant 0 : i32
    %c0_i32_0 = arith.constant 0 : i32
    %c0_i32_1 = arith.constant 0 : i32
    return %c0_i32, %c0_i32_0 : i32, i32
  }
  func.func @transform_8(%arg0: i32) -> (i32, i32) {
    %c0_i32 = arith.constant 0 : i32
    %c0_i32_0 = arith.constant 0 : i32
    %c0_i32_1 = arith.constant 0 : i32
    return %c0_i32, %c0_i32_0 : i32, i32
  }
  func.func @transform_9(%arg0: i32) -> (i32, i32) {
    %c0_i32 = arith.constant 0 : i32
    %c0_i32_0 = arith.constant 0 : i32
    return %arg0, %c0_i32 : i32, i32
  }
}

module attributes {stable_mosaic.version = 11 : i64} {
  func.func @_autoencoder_kernel(%arg0: i32, %arg1: memref<8x128xf32, #tpu.memory_space<vmem>>, %arg2: memref<128x256xf32, #tpu.memory_space<vmem>>, %arg3: memref<1x256xf32, #tpu.memory_space<vmem>>, %arg4: memref<256x64xf32, #tpu.memory_space<vmem>>, %arg5: memref<1x64xf32, #tpu.memory_space<vmem>>, %arg6: memref<64x256xf32, #tpu.memory_space<vmem>>, %arg7: memref<1x256xf32, #tpu.memory_space<vmem>>, %arg8: memref<256x128xf32, #tpu.memory_space<vmem>>, %arg9: memref<1x128xf32, #tpu.memory_space<vmem>>, %arg10: memref<8x128xf32, #tpu.memory_space<vmem>>) attributes {dimension_semantics = [#tpu.dimension_semantics<parallel>], iteration_bounds = array<i64: 4>, scalar_prefetch = 0 : i64, scratch_operands = 0 : i64, tpu.core_type = #tpu.core_type<tc>, window_params = [{transform_indices = @transform_0, window_bounds = array<i64: 8, 128>}, {pipeline_mode = #tpu.pipeline_mode<synchronous>, transform_indices = @transform_1, window_bounds = array<i64: 128, 256>}, {pipeline_mode = #tpu.pipeline_mode<synchronous>, transform_indices = @transform_2, window_bounds = array<i64: 1, 256>}, {pipeline_mode = #tpu.pipeline_mode<synchronous>, transform_indices = @transform_3, window_bounds = array<i64: 256, 64>}, {pipeline_mode = #tpu.pipeline_mode<synchronous>, transform_indices = @transform_4, window_bounds = array<i64: 1, 64>}, {pipeline_mode = #tpu.pipeline_mode<synchronous>, transform_indices = @transform_5, window_bounds = array<i64: 64, 256>}, {pipeline_mode = #tpu.pipeline_mode<synchronous>, transform_indices = @transform_6, window_bounds = array<i64: 1, 256>}, {pipeline_mode = #tpu.pipeline_mode<synchronous>, transform_indices = @transform_7, window_bounds = array<i64: 256, 128>}, {pipeline_mode = #tpu.pipeline_mode<synchronous>, transform_indices = @transform_8, window_bounds = array<i64: 1, 128>}, {transform_indices = @transform_9, window_bounds = array<i64: 8, 128>}]} {
    %c0 = arith.constant 0 : index
    %c0_0 = arith.constant 0 : index
    %0 = vector.load %arg1[%c0, %c0_0] : memref<8x128xf32, #tpu.memory_space<vmem>>, vector<8x128xf32>
    %c0_1 = arith.constant 0 : index
    %c0_2 = arith.constant 0 : index
    %1 = vector.load %arg2[%c0_1, %c0_2] : memref<128x256xf32, #tpu.memory_space<vmem>>, vector<128x256xf32>
    %cst = arith.constant dense<0.000000e+00> : vector<8x256xf32>
    %2 = tpu.matmul %0, %1, %cst {dimension_numbers = #tpu.dot_dimension_numbers<[1], [0], [0], [1], [0, 0, 1, 1], [], []>} : vector<8x128xf32>, vector<128x256xf32>, vector<8x256xf32> -> vector<8x256xf32>
    %c0_3 = arith.constant 0 : index
    %c0_4 = arith.constant 0 : index
    %3 = vector.load %arg3[%c0_3, %c0_4] : memref<1x256xf32, #tpu.memory_space<vmem>>, vector<1x256xf32>
    %4 = vector.broadcast %3 : vector<1x256xf32> to vector<8x256xf32>
    %5 = arith.addf %2, %4 : vector<8x256xf32>
    %cst_5 = arith.constant 0.000000e+00 : f32
    %6 = vector.broadcast %cst_5 : f32 to vector<8x256xf32>
    %7 = arith.maximumf %5, %6 : vector<8x256xf32>
    %c0_6 = arith.constant 0 : index
    %c0_7 = arith.constant 0 : index
    %8 = vector.load %arg4[%c0_6, %c0_7] : memref<256x64xf32, #tpu.memory_space<vmem>>, vector<256x64xf32>
    %cst_8 = arith.constant dense<0.000000e+00> : vector<8x64xf32>
    %9 = tpu.matmul %7, %8, %cst_8 {dimension_numbers = #tpu.dot_dimension_numbers<[1], [0], [0], [1], [0, 0, 1, 1], [], []>} : vector<8x256xf32>, vector<256x64xf32>, vector<8x64xf32> -> vector<8x64xf32>
    %c0_9 = arith.constant 0 : index
    %c0_10 = arith.constant 0 : index
    %10 = vector.load %arg5[%c0_9, %c0_10] : memref<1x64xf32, #tpu.memory_space<vmem>>, vector<1x64xf32>
    %11 = vector.broadcast %10 : vector<1x64xf32> to vector<8x64xf32>
    %12 = arith.addf %9, %11 : vector<8x64xf32>
    %c0_11 = arith.constant 0 : index
    %c0_12 = arith.constant 0 : index
    %13 = vector.load %arg6[%c0_11, %c0_12] : memref<64x256xf32, #tpu.memory_space<vmem>>, vector<64x256xf32>
    %cst_13 = arith.constant dense<0.000000e+00> : vector<8x256xf32>
    %14 = tpu.matmul %12, %13, %cst_13 {dimension_numbers = #tpu.dot_dimension_numbers<[1], [0], [0], [1], [0, 0, 1, 1], [], []>} : vector<8x64xf32>, vector<64x256xf32>, vector<8x256xf32> -> vector<8x256xf32>
    %c0_14 = arith.constant 0 : index
    %c0_15 = arith.constant 0 : index
    %15 = vector.load %arg7[%c0_14, %c0_15] : memref<1x256xf32, #tpu.memory_space<vmem>>, vector<1x256xf32>
    %16 = vector.broadcast %15 : vector<1x256xf32> to vector<8x256xf32>
    %17 = arith.addf %14, %16 : vector<8x256xf32>
    %cst_16 = arith.constant 0.000000e+00 : f32
    %18 = vector.broadcast %cst_16 : f32 to vector<8x256xf32>
    %19 = arith.maximumf %17, %18 : vector<8x256xf32>
    %c0_17 = arith.constant 0 : index
    %c0_18 = arith.constant 0 : index
    %20 = vector.load %arg8[%c0_17, %c0_18] : memref<256x128xf32, #tpu.memory_space<vmem>>, vector<256x128xf32>
    %cst_19 = arith.constant dense<0.000000e+00> : vector<8x128xf32>
    %21 = tpu.matmul %19, %20, %cst_19 {dimension_numbers = #tpu.dot_dimension_numbers<[1], [0], [0], [1], [0, 0, 1, 1], [], []>} : vector<8x256xf32>, vector<256x128xf32>, vector<8x128xf32> -> vector<8x128xf32>
    %c0_20 = arith.constant 0 : index
    %c0_21 = arith.constant 0 : index
    %22 = vector.load %arg9[%c0_20, %c0_21] : memref<1x128xf32, #tpu.memory_space<vmem>>, vector<1x128xf32>
    %23 = vector.broadcast %22 : vector<1x128xf32> to vector<8x128xf32>
    %24 = arith.addf %21, %23 : vector<8x128xf32>
    %c0_22 = arith.constant 0 : index
    %c0_23 = arith.constant 0 : index
    %25 = vector.load %arg10[%c0_22, %c0_23] : memref<8x128xf32, #tpu.memory_space<vmem>>, vector<8x128xf32>
    tpu.vector_store %arg10[%c0_22, %c0_23], %24 {strides = array<i32>} : memref<8x128xf32, #tpu.memory_space<vmem>>, vector<8x128xf32>,
    return
  }
  func.func @transform_0(%arg0: i32) -> (i32, i32) {
    %c0_i32 = arith.constant 0 : i32
    %c0_i32_0 = arith.constant 0 : i32
    return %arg0, %c0_i32 : i32, i32
  }
  func.func @transform_1(%arg0: i32) -> (i32, i32) {
    %c0_i32 = arith.constant 0 : i32
    %c0_i32_0 = arith.constant 0 : i32
    %c0_i32_1 = arith.constant 0 : i32
    return %c0_i32, %c0_i32_0 : i32, i32
  }
  func.func @transform_2(%arg0: i32) -> (i32, i32) {
    %c0_i32 = arith.constant 0 : i32
    %c0_i32_0 = arith.constant 0 : i32
    %c0_i32_1 = arith.constant 0 : i32
    return %c0_i32, %c0_i32_0 : i32, i32
  }
  func.func @transform_3(%arg0: i32) -> (i32, i32) {
    %c0_i32 = arith.constant 0 : i32
    %c0_i32_0 = arith.constant 0 : i32
    %c0_i32_1 = arith.constant 0 : i32
    return %c0_i32, %c0_i32_0 : i32, i32
  }
  func.func @transform_4(%arg0: i32) -> (i32, i32) {
    %c0_i32 = arith.constant 0 : i32
    %c0_i32_0 = arith.constant 0 : i32
    %c0_i32_1 = arith.constant 0 : i32
    return %c0_i32, %c0_i32_0 : i32, i32
  }
  func.func @transform_5(%arg0: i32) -> (i32, i32) {
    %c0_i32 = arith.constant 0 : i32
    %c0_i32_0 = arith.constant 0 : i32
    %c0_i32_1 = arith.constant 0 : i32
    return %c0_i32, %c0_i32_0 : i32, i32
  }
  func.func @transform_6(%arg0: i32) -> (i32, i32) {
    %c0_i32 = arith.constant 0 : i32
    %c0_i32_0 = arith.constant 0 : i32
    %c0_i32_1 = arith.constant 0 : i32
    return %c0_i32, %c0_i32_0 : i32, i32
  }
  func.func @transform_7(%arg0: i32) -> (i32, i32) {
    %c0_i32 = arith.constant 0 : i32
    %c0_i32_0 = arith.constant 0 : i32
    %c0_i32_1 = arith.constant 0 : i32
    return %c0_i32, %c0_i32_0 : i32, i32
  }
  func.func @transform_8(%arg0: i32) -> (i32, i32) {
    %c0_i32 = arith.constant 0 : i32
    %c0_i32_0 = arith.constant 0 : i32
    %c0_i32_1 = arith.constant 0 : i32
    return %c0_i32, %c0_i32_0 : i32, i32
  }
  func.func @transform_9(%arg0: i32) -> (i32, i32) {
    %c0_i32 = arith.constant 0 : i32
    %c0_i32_0 = arith.constant 0 : i32
    return %arg0, %c0_i32 : i32, i32
  }
}

</mosaic_0001>

<llo_original>
// kernel: tpu_custom_call.1
$region0: #{tpu_custom_call.1}
  #allocation0 [shape = 'u32[]', space=smem, size = 0x4, offset = 0x4, fixed_abs, tag = 'smem constant byte address 0x4 - core index']
  #allocation1 [shape = 'u32[144,128]{1,0:T(1,128)}', space=vmem, size = 0x12000, scoped, tag = 'internal scratch']
  %s0 = inlined_call_operand.hbm [shape: f32[32,128], index: 0, kind: input, shape index: {}]
  %s1 = inlined_call_operand.vmem [shape: f32[128,256], index: 1, kind: input, shape index: {}]
  %s2 = inlined_call_operand.vmem [shape: f32[1,256], index: 2, kind: input, shape index: {}]
  %s3 = inlined_call_operand.vmem [shape: f32[256,64], index: 3, kind: input, shape index: {}]
  %s4 = inlined_call_operand.vmem [shape: f32[1,64], index: 4, kind: input, shape index: {}]
  %s5 = inlined_call_operand.vmem [shape: f32[64,256], index: 5, kind: input, shape index: {}]
  %s6 = inlined_call_operand.vmem [shape: f32[1,256], index: 6, kind: input, shape index: {}]
  %s7 = inlined_call_operand.hbm [shape: f32[256,128], index: 7, kind: input, shape index: {}]
  %s8 = inlined_call_operand.vmem [shape: f32[1,128], index: 8, kind: input, shape index: {}]
  %s9 = inlined_call_operand.hbm [shape: f32[32,128], index: 9, kind: output, shape index: {}]
  %s10 = sld [smem:[#allocation0]]
  $region77: #{tpu_custom_call.1} parent=0
    _
  %s12 = ssub.s32 1, %s10
  %s13 = scalar_select 0, %s12, %s10
  $region1: #{tpu_custom_call.1} parent=0
    #allocation2 [shape = 'u8[8192]{0}', space=vmem, size = 0x2000, scoped, tag = 'input window, operand 0']
    #allocation3 [shape = 's32[2]{0}', space=sflag, size = 0x8, scoped, tag = 'scoped memory for tpu_custom_call.1']
    #allocation4 [shape = 's32[2]{0}', space=sflag, size = 0x8, scoped, tag = 'scoped memory for tpu_custom_call.1']
    #allocation5 [shape = 'u8[131072]{0}', space=vmem, size = 0x20000, scoped, tag = 'input window, operand 7, single buffered']
    #allocation6 [shape = 's32[1]{0}', space=sflag, size = 0x4, scoped, tag = 'scoped memory for tpu_custom_call.1']
    #allocation7 [shape = 'u8[8192]{0}', space=vmem, size = 0x2000, scoped, tag = 'output window, operand 0']
    %14 = vsyncpa [#allocation3], 0
    %s15 = scalar_lea.sflag [#allocation3], 1
    %16 = vsyncpa %s15, 0
    %17 = vsyncpa [#allocation6], 0
    %18 = vsyncpa [#allocation4], 0
    %s19 = scalar_lea.sflag [#allocation4], 1
    %20 = vsyncpa %s19, 0
    loop: start=0, step=1, limit=6
    $region2: #{tpu_custom_call.1} parent=1 // loop_pre_header
      _
    $region3: #{tpu_custom_call.1} parent=1 // loop_header
      %s22 = sphi 0, %s26
      %p23 = scmp.ge.s32.totalorder %s22, 6
      %s32 = sphi 0, %s34
      %s35 = sphi 0, %s32
      %s36 = sphi 0, %s35
      %s52 = sphi 0, %s36
      %s56 = sphi 0, %s56
      %s58 = sphi 0, %s56
      %s59 = sphi 0, %s58
      %s73 = sphi 0, %s59
      %s77 = sphi 0, %s77
      %s79 = sphi 0, %s77
      %s80 = sphi 0, %s79
      %s94 = sphi 0, %s80
      %s98 = sphi 0, %s98
      %s100 = sphi 0, %s98
      %s101 = sphi 0, %s100
      %s115 = sphi 0, %s101
      %s119 = sphi 0, %s119
      %s121 = sphi 0, %s119
      %s122 = sphi 0, %s121
      %s136 = sphi 0, %s122
      %s140 = sphi 0, %s140
      %s142 = sphi 0, %s140
      %s143 = sphi 0, %s142
      %s157 = sphi 0, %s143
      %s161 = sphi 0, %s161
      %s163 = sphi 0, %s161
      %s164 = sphi 0, %s163
      %s178 = sphi 0, %s164
      %s182 = sphi 0, %s182
      %s184 = sphi 0, %s182
      %s185 = sphi 0, %s184
      %s199 = sphi 0, %s185
      %s203 = sphi 0, %s203
      %s205 = sphi 0, %s203
      %s206 = sphi 0, %s205
      %s220 = sphi 0, %s206
      %s226 = sphi 0, %s228
      %s229 = sphi 0, %s226
      %s230 = sphi 0, %s229
      %s246 = sphi 0, %s230
    $region4: #{tpu_custom_call.1} parent=1 // loop_header_branch
      %25 = sbr.rel (%p23) target = $region8
    $region5: #{tpu_custom_call.1} parent=1 // loop_body
      %s27 = ssub.s32 %s22, 1
      %s28 = ssub.s32 %s22, 2
      %s29 = sadd.s32 %s22, 1
      %s30 = ssub.s32 %s22, %s29
      %p31 = scmp.eq.s32.totalorder %s30, 0
      %s33 = sadd.s32 %s32, 1
      %s34 = scalar_select %p31, %s32, %s33
      %p37 = pneg %p31
      %p38 = scmp.eq.s32.totalorder %s22, 3
      %p39 = por %p37, %p38
      %p40 = scmp.ne.s32.totalorder %s32, %s35
      %p41 = scmp.eq.s32.totalorder %s22, 0
      %p42 = por %p40, %p41
      %p43 = scmp.ne.s32.totalorder %s32, %s35
      %p44 = scmp.eq.s32.totalorder %s27, 3
      %p45 = por %p43, %p44
      %p46 = scmp.ne.s32.totalorder %s35, %s36
      %p47 = scmp.eq.s32.totalorder %s27, 0
      %p48 = por %p46, %p47
      %p49 = scmp.ne.s32.totalorder %s35, %s36
      %p50 = scmp.eq.s32.totalorder %s28, 3
      %p51 = por %p49, %p50
      %p53 = scmp.ne.s32.totalorder %s36, %s52
      %p54 = scmp.eq.s32.totalorder %s28, 0
      %p55 = por %p53, %p54
      %s57 = sadd.s32 %s56, 1
      %p60 = scmp.eq.s32.totalorder %s22, 3
      %p61 = scmp.ne.s32.totalorder %s56, %s58
      %p62 = scmp.eq.s32.totalorder %s22, 0
      %p63 = por %p61, %p62
      %p64 = scmp.ne.s32.totalorder %s56, %s58
      %p65 = scmp.eq.s32.totalorder %s27, 3
      %p66 = por %p64, %p65
      %p67 = scmp.ne.s32.totalorder %s58, %s59
      %p68 = scmp.eq.s32.totalorder %s27, 0
      %p69 = por %p67, %p68
      %p70 = scmp.ne.s32.totalorder %s58, %s59
      %p71 = scmp.eq.s32.totalorder %s28, 3
      %p72 = por %p70, %p71
      %p74 = scmp.ne.s32.totalorder %s59, %s73
      %p75 = scmp.eq.s32.totalorder %s28, 0
      %p76 = por %p74, %p75
      %s78 = sadd.s32 %s77, 1
      %p81 = scmp.eq.s32.totalorder %s22, 3
      %p82 = scmp.ne.s32.totalorder %s77, %s79
      %p83 = scmp.eq.s32.totalorder %s22, 0
      %p84 = por %p82, %p83
      %p85 = scmp.ne.s32.totalorder %s77, %s79
      %p86 = scmp.eq.s32.totalorder %s27, 3
      %p87 = por %p85, %p86
      %p88 = scmp.ne.s32.totalorder %s79, %s80
      %p89 = scmp.eq.s32.totalorder %s27, 0
      %p90 = por %p88, %p89
      %p91 = scmp.ne.s32.totalorder %s79, %s80
      %p92 = scmp.eq.s32.totalorder %s28, 3
      %p93 = por %p91, %p92
      %p95 = scmp.ne.s32.totalorder %s80, %s94
      %p96 = scmp.eq.s32.totalorder %s28, 0
      %p97 = por %p95, %p96
      %s99 = sadd.s32 %s98, 1
      %p102 = scmp.eq.s32.totalorder %s22, 3
      %p103 = scmp.ne.s32.totalorder %s98, %s100
      %p104 = scmp.eq.s32.totalorder %s22, 0
      %p105 = por %p103, %p104
      %p106 = scmp.ne.s32.totalorder %s98, %s100
      %p107 = scmp.eq.s32.totalorder %s27, 3
      %p108 = por %p106, %p107
      %p109 = scmp.ne.s32.totalorder %s100, %s101
      %p110 = scmp.eq.s32.totalorder %s27, 0
      %p111 = por %p109, %p110
      %p112 = scmp.ne.s32.totalorder %s100, %s101
      %p113 = scmp.eq.s32.totalorder %s28, 3
      %p114 = por %p112, %p113
      %p116 = scmp.ne.s32.totalorder %s101, %s115
      %p117 = scmp.eq.s32.totalorder %s28, 0
      %p118 = por %p116, %p117
      %s120 = sadd.s32 %s119, 1
      %p123 = scmp.eq.s32.totalorder %s22, 3
      %p124 = scmp.ne.s32.totalorder %s119, %s121
      %p125 = scmp.eq.s32.totalorder %s22, 0
      %p126 = por %p124, %p125
      %p127 = scmp.ne.s32.totalorder %s119, %s121
      %p128 = scmp.eq.s32.totalorder %s27, 3
      %p129 = por %p127, %p128
      %p130 = scmp.ne.s32.totalorder %s121, %s122
      %p131 = scmp.eq.s32.totalorder %s27, 0
      %p132 = por %p130, %p131
      %p133 = scmp.ne.s32.totalorder %s121, %s122
      %p134 = scmp.eq.s32.totalorder %s28, 3
      %p135 = por %p133, %p134
      %p137 = scmp.ne.s32.totalorder %s122, %s136
      %p138 = scmp.eq.s32.totalorder %s28, 0
      %p139 = por %p137, %p138
      %s141 = sadd.s32 %s140, 1
      %p144 = scmp.eq.s32.totalorder %s22, 3
      %p145 = scmp.ne.s32.totalorder %s140, %s142
      %p146 = scmp.eq.s32.totalorder %s22, 0
      %p147 = por %p145, %p146
      %p148 = scmp.ne.s32.totalorder %s140, %s142
      %p149 = scmp.eq.s32.totalorder %s27, 3
      %p150 = por %p148, %p149
      %p151 = scmp.ne.s32.totalorder %s142, %s143
      %p152 = scmp.eq.s32.totalorder %s27, 0
      %p153 = por %p151, %p152
      %p154 = scmp.ne.s32.totalorder %s142, %s143
      %p155 = scmp.eq.s32.totalorder %s28, 3
      %p156 = por %p154, %p155
      %p158 = scmp.ne.s32.totalorder %s143, %s157
      %p159 = scmp.eq.s32.totalorder %s28, 0
      %p160 = por %p158, %p159
      %s162 = sadd.s32 %s161, 1
      %p165 = scmp.eq.s32.totalorder %s22, 3
      %p166 = scmp.ne.s32.totalorder %s161, %s163
      %p167 = scmp.eq.s32.totalorder %s22, 0
      %p168 = por %p166, %p167
      %p169 = scmp.ne.s32.totalorder %s161, %s163
      %p170 = scmp.eq.s32.totalorder %s27, 3
      %p171 = por %p169, %p170
      %p172 = scmp.ne.s32.totalorder %s163, %s164
      %p173 = scmp.eq.s32.totalorder %s27, 0
      %p174 = por %p172, %p173
      %p175 = scmp.ne.s32.totalorder %s163, %s164
      %p176 = scmp.eq.s32.totalorder %s28, 3
      %p177 = por %p175, %p176
      %p179 = scmp.ne.s32.totalorder %s164, %s178
      %p180 = scmp.eq.s32.totalorder %s28, 0
      %p181 = por %p179, %p180
      %s183 = sadd.s32 %s182, 1
      %p186 = scmp.eq.s32.totalorder %s22, 3
      %p187 = scmp.ne.s32.totalorder %s182, %s184
      %p188 = scmp.eq.s32.totalorder %s22, 0
      %p189 = por %p187, %p188
      %p190 = scmp.ne.s32.totalorder %s182, %s184
      %p191 = scmp.eq.s32.totalorder %s27, 3
      %p192 = por %p190, %p191
      %p193 = scmp.ne.s32.totalorder %s184, %s185
      %p194 = scmp.eq.s32.totalorder %s27, 0
      %p195 = por %p193, %p194
      %p196 = scmp.ne.s32.totalorder %s184, %s185
      %p197 = scmp.eq.s32.totalorder %s28, 3
      %p198 = por %p196, %p197
      %p200 = scmp.ne.s32.totalorder %s185, %s199
      %p201 = scmp.eq.s32.totalorder %s28, 0
      %p202 = por %p200, %p201
      %s204 = sadd.s32 %s203, 1
      %p207 = scmp.eq.s32.totalorder %s22, 3
      %p208 = scmp.ne.s32.totalorder %s203, %s205
      %p209 = scmp.eq.s32.totalorder %s22, 0
      %p210 = por %p208, %p209
      %p211 = scmp.ne.s32.totalorder %s203, %s205
      %p212 = scmp.eq.s32.totalorder %s27, 3
      %p213 = por %p211, %p212
      %p214 = scmp.ne.s32.totalorder %s205, %s206
      %p215 = scmp.eq.s32.totalorder %s27, 0
      %p216 = por %p214, %p215
      %p217 = scmp.ne.s32.totalorder %s205, %s206
      %p218 = scmp.eq.s32.totalorder %s28, 3
      %p219 = por %p217, %p218
      %p221 = scmp.ne.s32.totalorder %s206, %s220
      %p222 = scmp.eq.s32.totalorder %s28, 0
      %p223 = por %p221, %p222
      %s224 = ssub.s32 %s22, %s29
      %p225 = scmp.eq.s32.totalorder %s224, 0
      %s227 = sadd.s32 %s226, 1
      %s228 = scalar_select %p225, %s226, %s227
      %p231 = pneg %p225
      %p232 = scmp.eq.s32.totalorder %s22, 3
      %p233 = por %p231, %p232
      %p234 = scmp.ne.s32.totalorder %s226, %s229
      %p235 = scmp.eq.s32.totalorder %s22, 0
      %p236 = por %p234, %p235
      %p237 = scmp.ne.s32.totalorder %s226, %s229
      %p238 = scmp.eq.s32.totalorder %s27, 3
      %p239 = por %p237, %p238
      %p240 = scmp.ne.s32.totalorder %s229, %s230
      %p241 = scmp.eq.s32.totalorder %s27, 0
      %p242 = por %p240, %p241
      %p243 = scmp.ne.s32.totalorder %s229, %s230
      %p244 = scmp.eq.s32.totalorder %s28, 3
      %p245 = por %p243, %p244
      %p247 = scmp.ne.s32.totalorder %s230, %s246
      %p248 = scmp.eq.s32.totalorder %s28, 0
      %p249 = por %p247, %p248
      %p250 = scmp.le.s32.totalorder 1, %s22
      %p251 = scmp.lt.s32.totalorder %s22, 5
      %p252 = pnand %p250, %p251
      %p253 = pneg %p252
      // Predicated region
      $region9: #{tpu_custom_call.1} parent=5 // pred_check
        _
      $region10: #{tpu_custom_call.1} parent=5 // pred_check_branch
        %255 = sbr.rel (%p252) target = $region12
      $region11: #{tpu_custom_call.1} parent=5 // pred_region
        %s256 = ssub.s32 %s22, 1
        // Predicated region
        $region13: #{tpu_custom_call.1} parent=11 // pred_check
          %p257 = pneg %p69
        $region14: #{tpu_custom_call.1} parent=11 // pred_check_branch
          %259 = sbr.rel (%p257) target = $region16
        $region15: #{tpu_custom_call.1} parent=11 // pred_region
          _
        $region16: #{tpu_custom_call.1} parent=11 // pred_fallthru
          _
        // Predicated region
        $region17: #{tpu_custom_call.1} parent=11 // pred_check
          %p260 = pneg %p90
        $region18: #{tpu_custom_call.1} parent=11 // pred_check_branch
          %262 = sbr.rel (%p260) target = $region20
        $region19: #{tpu_custom_call.1} parent=11 // pred_region
          _
        $region20: #{tpu_custom_call.1} parent=11 // pred_fallthru
          _
        // Predicated region
        $region21: #{tpu_custom_call.1} parent=11 // pred_check
          %p263 = pneg %p111
        $region22: #{tpu_custom_call.1} parent=11 // pred_check_branch
          %265 = sbr.rel (%p263) target = $region24
        $region23: #{tpu_custom_call.1} parent=11 // pred_region
          _
        $region24: #{tpu_custom_call.1} parent=11 // pred_fallthru
          _
        // Predicated region
        $region25: #{tpu_custom_call.1} parent=11 // pred_check
          %p266 = pneg %p132
        $region26: #{tpu_custom_call.1} parent=11 // pred_check_branch
          %268 = sbr.rel (%p266) target = $region28
        $region27: #{tpu_custom_call.1} parent=11 // pred_region
          _
        $region28: #{tpu_custom_call.1} parent=11 // pred_fallthru
          _
        // Predicated region
        $region29: #{tpu_custom_call.1} parent=11 // pred_check
          %p269 = pneg %p153
        $region30: #{tpu_custom_call.1} parent=11 // pred_check_branch
          %271 = sbr.rel (%p269) target = $region32
        $region31: #{tpu_custom_call.1} parent=11 // pred_region
          _
        $region32: #{tpu_custom_call.1} parent=11 // pred_fallthru
          _
        // Predicated region
        $region33: #{tpu_custom_call.1} parent=11 // pred_check
          %p272 = pneg %p174
        $region34: #{tpu_custom_call.1} parent=11 // pred_check_branch
          %274 = sbr.rel (%p272) target = $region36
        $region35: #{tpu_custom_call.1} parent=11 // pred_region
          _
        $region36: #{tpu_custom_call.1} parent=11 // pred_fallthru
          _
        // Predicated region
        $region37: #{tpu_custom_call.1} parent=11 // pred_check
          %p275 = pneg %p195
        $region38: #{tpu_custom_call.1} parent=11 // pred_check_branch
          %277 = sbr.rel (%p275) target = $region40
        $region39: #{tpu_custom_call.1} parent=11 // pred_region
          %s279 = ssub.s32 4096, 4096
          %280 = vsyncadd [#allocation6], %s279
          %s281 = sshll.u32 [#allocation5], 4
          %s282 = int_to_ptr.vmem [resolvable:$true] %s281
          %287 = dma.hbm_to_vmem [thread:$0]  %s7, 4096, %s282, [#allocation6], 128, 128, 8
        $region40: #{tpu_custom_call.1} parent=11 // pred_fallthru
          _
        // Predicated region
        $region41: #{tpu_custom_call.1} parent=11 // pred_check
          %p288 = pneg %p216
        $region42: #{tpu_custom_call.1} parent=11 // pred_check_branch
          %290 = sbr.rel (%p288) target = $region44
        $region43: #{tpu_custom_call.1} parent=11 // pred_region
          _
        $region44: #{tpu_custom_call.1} parent=11 // pred_fallthru
          _
      $region12: #{tpu_custom_call.1} parent=5 // pred_fallthru
        _
      %p291 = scmp.lt.s32.totalorder %s22, 4
      // Predicated region
      $region45: #{tpu_custom_call.1} parent=5 // pred_check
        %p292 = pneg %p291
      $region46: #{tpu_custom_call.1} parent=5 // pred_check_branch
        %294 = sbr.rel (%p292) target = $region48
      $region47: #{tpu_custom_call.1} parent=5 // pred_region
        // Predicated region
        $region49: #{tpu_custom_call.1} parent=47 // pred_check
          %p295 = pneg %p42
        $region50: #{tpu_custom_call.1} parent=47 // pred_check_branch
          %297 = sbr.rel (%p295) target = $region52
        $region51: #{tpu_custom_call.1} parent=47 // pred_region
          %s298 = sand.u32 %s32, 1
          %s299 = scalar_lea.sflag [#allocation3], %s298
          %s300 = sand.u32 %s32, 1
          %s301 = smul.addr %s300, 8
          %s302 = scalar_lea.vmem [#allocation2], %s301
          %s304 = ssub.s32 128, 128
          %305 = vsyncadd %s299, %s304
          %s306 = smul.addr %s22, 128
          %s307 = scalar_lea.hbm %s0, %s306
          %s309 = sshll.u32 %s302, 4
          %s310 = int_to_ptr.vmem [resolvable:$true] %s309
          %312 = dma.hbm_to_vmem [thread:$0]  %s307, 128, %s310, %s299
        $region52: #{tpu_custom_call.1} parent=47 // pred_fallthru
          _
      $region48: #{tpu_custom_call.1} parent=5 // pred_fallthru
        _
      %p313 = scmp.le.s32.totalorder 1, %s22
      %p314 = scmp.lt.s32.totalorder %s22, 5
      %p315 = pnand %p313, %p314
      %p316 = pneg %p315
      // Predicated region
      $region53: #{tpu_custom_call.1} parent=5 // pred_check
        _
      $region54: #{tpu_custom_call.1} parent=5 // pred_check_branch
        %318 = sbr.rel (%p315) target = $region56
      $region55: #{tpu_custom_call.1} parent=5 // pred_region
        %s319 = ssub.s32 %s22, 1
        %s320 = sand.u32 %s35, 1
        %s321 = scalar_lea.sflag [#allocation3], %s320
        %s322 = sand.u32 %s35, 1
        %s323 = smul.addr %s322, 8
        %s324 = scalar_lea.vmem [#allocation2], %s323
        // Predicated region
        $region57: #{tpu_custom_call.1} parent=55 // pred_check
          %p325 = pneg %p48
        $region58: #{tpu_custom_call.1} parent=55 // pred_check_branch
          %327 = sbr.rel (%p325) target = $region60
        $region59: #{tpu_custom_call.1} parent=55 // pred_region
          %328 = dma.done %s321, 128
        $region60: #{tpu_custom_call.1} parent=55 // pred_fallthru
          _
        // Predicated region
        $region61: #{tpu_custom_call.1} parent=55 // pred_check
          %p329 = pneg %p195
        $region62: #{tpu_custom_call.1} parent=55 // pred_check_branch
          %331 = sbr.rel (%p329) target = $region64
        $region63: #{tpu_custom_call.1} parent=55 // pred_region
          %332 = dma.done [#allocation6], 4096
        $region64: #{tpu_custom_call.1} parent=55 // pred_fallthru
          _
        %s333 = sand.u32 %s35, 1
        %s334 = scalar_lea.sflag [#allocation3], %s333
        %s335 = sand.u32 %s35, 1
        %s336 = smul.addr %s335, 8
        %s337 = scalar_lea.vmem [#allocation2], %s336
        %p338 = pneg %p48
        %p339 = pneg %p45
        %p340 = pneg %p69
        %p341 = pneg %p66
        %p342 = pneg %p90
        %p343 = pneg %p87
        %p344 = pneg %p111
        %p345 = pneg %p108
        %p346 = pneg %p132
        %p347 = pneg %p129
        %p348 = pneg %p153
        %p349 = pneg %p150
        %p350 = pneg %p174
        %p351 = pneg %p171
        %p352 = pneg %p195
        %p353 = pneg %p192
        %p354 = pneg %p216
        %p355 = pneg %p213
        %p356 = pneg %p242
        %p357 = pneg %p239
        %s358 = sand.u32 %s229, 1
        %s359 = scalar_lea.sflag [#allocation4], %s358
        %s360 = sand.u32 %s229, 1
        %s361 = smul.addr %s360, 8
        %s362 = scalar_lea.vmem [#allocation7], %s361
        %v363 = vld [vmem:[%s324] sm:$0xff]
        %v364 = vld [vmem:[%s1] sm:$0xff]
        %v365 = vld [vmem:[%s1 + $0x8] sm:$0xff]
        %v366 = vld [vmem:[%s1 + $0x10] sm:$0xff]
        %v367 = vld [vmem:[%s1 + $0x18] sm:$0xff]
        %v368 = vld [vmem:[%s1 + $0x20] sm:$0xff]
        %v369 = vld [vmem:[%s1 + $0x28] sm:$0xff]
        %v370 = vld [vmem:[%s1 + $0x30] sm:$0xff]
        %v371 = vld [vmem:[%s1 + $0x38] sm:$0xff]
        %v372 = vld [vmem:[%s1 + $0x40] sm:$0xff]
        %v373 = vld [vmem:[%s1 + $0x48] sm:$0xff]
        %v374 = vld [vmem:[%s1 + $0x50] sm:$0xff]
        %v375 = vld [vmem:[%s1 + $0x58] sm:$0xff]
        %v376 = vld [vmem:[%s1 + $0x60] sm:$0xff]
        %v377 = vld [vmem:[%s1 + $0x68] sm:$0xff]
        %v378 = vld [vmem:[%s1 + $0x70] sm:$0xff]
        %v379 = vld [vmem:[%s1 + $0x78] sm:$0xff]
        %v380 = vld [vmem:[%s1 + $0x80] sm:$0xff]
        %v381 = vld [vmem:[%s1 + $0x88] sm:$0xff]
        %v382 = vld [vmem:[%s1 + $0x90] sm:$0xff]
        %v383 = vld [vmem:[%s1 + $0x98] sm:$0xff]
        %v384 = vld [vmem:[%s1 + $0xa0] sm:$0xff]
        %v385 = vld [vmem:[%s1 + $0xa8] sm:$0xff]
        %v386 = vld [vmem:[%s1 + $0xb0] sm:$0xff]
        %v387 = vld [vmem:[%s1 + $0xb8] sm:$0xff]
        %v388 = vld [vmem:[%s1 + $0xc0] sm:$0xff]
        %v389 = vld [vmem:[%s1 + $0xc8] sm:$0xff]
        %v390 = vld [vmem:[%s1 + $0xd0] sm:$0xff]
        %v391 = vld [vmem:[%s1 + $0xd8] sm:$0xff]
        %v392 = vld [vmem:[%s1 + $0xe0] sm:$0xff]
        %v393 = vld [vmem:[%s1 + $0xe8] sm:$0xff]
        %v394 = vld [vmem:[%s1 + $0xf0] sm:$0xff]
        %v395 = vld [vmem:[%s1 + $0xf8] sm:$0xff]
        %v396 = vld [vmem:[%s2] sm:$0x3]
        %v398 = vlaneseq
        %v399 = vshrl.u32 %v398, 7
        %v400 = vsub.s32 0, %v399
        %v401 = vrot.slane %v396, %v400
        %v402 = vlaneseq
        %v403 = vshrl.u32 %v402, 7
        %v404 = vsub.s32 1, %v403
        %v405 = vrot.slane %v396, %v404
        %408 = vmatprep.subr.mxu0 %v365
        %409 = vmatpush1.msra.mxu0 %v364
        %410 = vmatprep.subr.mxu0 %v367
        %411 = vmatpush1.msra.mxu0 %v366
        %412 = vmatprep.subr.mxu0 %v369
        %413 = vmatpush1.msra.mxu0 %v368
        %414 = vmatprep.subr.mxu0 %v371
        %415 = vmatpush1.msra.mxu0 %v370
        %416 = vmatprep.subr.mxu0 %v373
        %417 = vmatpush1.msra.mxu0 %v372
        %418 = vmatprep.subr.mxu0 %v375
        %419 = vmatpush1.msra.mxu0 %v374
        %420 = vmatprep.subr.mxu0 %v377
        %421 = vmatpush1.msra.mxu0 %v376
        %422 = vmatprep.subr.mxu0 %v379
        %423 = vmatpush1.msra.mxu0 %v378
        %424 = vmatprep.subr.mxu0 %v381
        %425 = vmatpush1.msra.mxu0 %v380
        %426 = vmatprep.subr.mxu0 %v383
        %427 = vmatpush1.msra.mxu0 %v382
        %428 = vmatprep.subr.mxu0 %v385
        %429 = vmatpush1.msra.mxu0 %v384
        %430 = vmatprep.subr.mxu0 %v387
        %431 = vmatpush1.msra.mxu0 %v386
        %432 = vmatprep.subr.mxu0 %v389
        %433 = vmatpush1.msra.mxu0 %v388
        %434 = vmatprep.subr.mxu0 %v391
        %435 = vmatpush1.msra.mxu0 %v390
        %436 = vmatprep.subr.mxu0 %v393
        %437 = vmatpush1.msra.mxu0 %v392
        %438 = vmatprep.subr.mxu0 %v395
        %439 = vmatpush1.msra.mxu0 %v394
        %440 = vmatprep.subr.mxu0 0.0
        %441 = vmatpush1.msra.mxu0 0.0
        %442 = vmatprep.subr.mxu0 0.0
        %443 = vmatpush1.msra.mxu0 0.0
        %444 = vmatprep.subr.mxu0 0.0
        %445 = vmatpush1.msra.mxu0 0.0
        %446 = vmatprep.subr.mxu0 0.0
        %447 = vmatpush1.msra.mxu0 0.0
        %448 = vmatprep.subr.mxu0 0.0
        %449 = vmatpush1.msra.mxu0 0.0
        %450 = vmatprep.subr.mxu0 0.0
        %451 = vmatpush1.msra.mxu0 0.0
        %452 = vmatprep.subr.mxu0 0.0
        %453 = vmatpush1.msra.mxu0 0.0
        %454 = vmatprep.subr.mxu0 0.0
        %455 = vmatpush1.msra.mxu0 0.0
        %456 = vmatprep.subr.mxu0 0.0
        %457 = vmatpush1.msra.mxu0 0.0
        %458 = vmatprep.subr.mxu0 0.0
        %459 = vmatpush1.msra.mxu0 0.0
        %460 = vmatprep.subr.mxu0 0.0
        %461 = vmatpush1.msra.mxu0 0.0
        %462 = vmatprep.subr.mxu0 0.0
        %463 = vmatpush1.msra.mxu0 0.0
        %464 = vmatprep.subr.mxu0 0.0
        %465 = vmatpush1.msra.mxu0 0.0
        %466 = vmatprep.subr.mxu0 0.0
        %467 = vmatpush1.msra.mxu0 0.0
        %468 = vmatprep.subr.mxu0 0.0
        %469 = vmatpush1.msra.mxu0 0.0
        %470 = vmatprep.subr.mxu0 0.0
        %471 = vmatpush1.msra.mxu0 0.0
        %472 = vmatprep.mubr.f32.mxu0 0.0
        %473 = vmatmul.mubr.f32.gmra.mrb[0].mxu0 %v363
        %v474 = vpop.f32.mrb[0].mxu0
        %v475 = vadd.f32 %v401, %v474
        %v476 = vpop.f32.mrb[0].mxu0
        %v477 = vadd.f32 %v405, %v476
        %478 = vdwg.mxu0
        %v479 = vmax.f32 %v475, 0.0
        %v480 = vmax.f32 %v477, 0.0
        %v481 = vld [vmem:[%s3] sm:$0xff]
        %v482 = vld [vmem:[%s3 + $0x8] sm:$0xff]
        %v483 = vld [vmem:[%s3 + $0x10] sm:$0xff]
        %v484 = vld [vmem:[%s3 + $0x18] sm:$0xff]
        %v485 = vld [vmem:[%s3 + $0x20] sm:$0xff]
        %v486 = vld [vmem:[%s3 + $0x28] sm:$0xff]
        %v487 = vld [vmem:[%s3 + $0x30] sm:$0xff]
        %v488 = vld [vmem:[%s3 + $0x38] sm:$0xff]
        %v489 = vld [vmem:[%s3 + $0x40] sm:$0xff]
        %v490 = vld [vmem:[%s3 + $0x48] sm:$0xff]
        %v491 = vld [vmem:[%s3 + $0x50] sm:$0xff]
        %v492 = vld [vmem:[%s3 + $0x58] sm:$0xff]
        %v493 = vld [vmem:[%s3 + $0x60] sm:$0xff]
        %v494 = vld [vmem:[%s3 + $0x68] sm:$0xff]
        %v495 = vld [vmem:[%s3 + $0x70] sm:$0xff]
        %v496 = vld [vmem:[%s3 + $0x78] sm:$0xff]
        %v497 = vld [vmem:[%s3 + $0x80] sm:$0xff]
        %v498 = vld [vmem:[%s3 + $0x88] sm:$0xff]
        %v499 = vld [vmem:[%s3 + $0x90] sm:$0xff]
        %v500 = vld [vmem:[%s3 + $0x98] sm:$0xff]
        %v501 = vld [vmem:[%s3 + $0xa0] sm:$0xff]
        %v502 = vld [vmem:[%s3 + $0xa8] sm:$0xff]
        %v503 = vld [vmem:[%s3 + $0xb0] sm:$0xff]
        %v504 = vld [vmem:[%s3 + $0xb8] sm:$0xff]
        %v505 = vld [vmem:[%s3 + $0xc0] sm:$0xff]
        %v506 = vld [vmem:[%s3 + $0xc8] sm:$0xff]
        %v507 = vld [vmem:[%s3 + $0xd0] sm:$0xff]
        %v508 = vld [vmem:[%s3 + $0xd8] sm:$0xff]
        %v509 = vld [vmem:[%s3 + $0xe0] sm:$0xff]
        %v510 = vld [vmem:[%s3 + $0xe8] sm:$0xff]
        %v511 = vld [vmem:[%s3 + $0xf0] sm:$0xff]
        %v512 = vld [vmem:[%s3 + $0xf8] sm:$0xff]
        %v513 = vld [vmem:[%s4] sm:$0x1]
        %v515 = vlaneseq
        %v516 = vshrl.u32 %v515, 7
        %v517 = vsub.s32 0, %v516
        %v518 = vrot.slane %v513, %v517
        %520 = vmatprep.subr.mxu0 0.0
        %521 = vmatpush1.msra.mxu0 %v481
        %522 = vmatprep.subr.mxu0 0.0
        %523 = vmatpush1.msra.mxu0 %v482
        %524 = vmatprep.subr.mxu0 0.0
        %525 = vmatpush1.msra.mxu0 %v483
        %526 = vmatprep.subr.mxu0 0.0
        %527 = vmatpush1.msra.mxu0 %v484
        %528 = vmatprep.subr.mxu0 0.0
        %529 = vmatpush1.msra.mxu0 %v485
        %530 = vmatprep.subr.mxu0 0.0
        %531 = vmatpush1.msra.mxu0 %v486
        %532 = vmatprep.subr.mxu0 0.0
        %533 = vmatpush1.msra.mxu0 %v487
        %534 = vmatprep.subr.mxu0 0.0
        %535 = vmatpush1.msra.mxu0 %v488
        %536 = vmatprep.subr.mxu0 0.0
        %537 = vmatpush1.msra.mxu0 %v489
        %538 = vmatprep.subr.mxu0 0.0
        %539 = vmatpush1.msra.mxu0 %v490
        %540 = vmatprep.subr.mxu0 0.0
        %541 = vmatpush1.msra.mxu0 %v491
        %542 = vmatprep.subr.mxu0 0.0
        %543 = vmatpush1.msra.mxu0 %v492
        %544 = vmatprep.subr.mxu0 0.0
        %545 = vmatpush1.msra.mxu0 %v493
        %546 = vmatprep.subr.mxu0 0.0
        %547 = vmatpush1.msra.mxu0 %v494
        %548 = vmatprep.subr.mxu0 0.0
        %549 = vmatpush1.msra.mxu0 %v495
        %550 = vmatprep.subr.mxu0 0.0
        %551 = vmatpush1.msra.mxu0 %v496
        %552 = vmatprep.subr.mxu0 0.0
        %553 = vmatpush1.msra.mxu0 %v497
        %554 = vmatprep.subr.mxu0 0.0
        %555 = vmatpush1.msra.mxu0 %v498
        %556 = vmatprep.subr.mxu0 0.0
        %557 = vmatpush1.msra.mxu0 %v499
        %558 = vmatprep.subr.mxu0 0.0
        %559 = vmatpush1.msra.mxu0 %v500
        %560 = vmatprep.subr.mxu0 0.0
        %561 = vmatpush1.msra.mxu0 %v501
        %562 = vmatprep.subr.mxu0 0.0
        %563 = vmatpush1.msra.mxu0 %v502
        %564 = vmatprep.subr.mxu0 0.0
        %565 = vmatpush1.msra.mxu0 %v503
        %566 = vmatprep.subr.mxu0 0.0
        %567 = vmatpush1.msra.mxu0 %v504
        %568 = vmatprep.subr.mxu0 0.0
        %569 = vmatpush1.msra.mxu0 %v505
        %570 = vmatprep.subr.mxu0 0.0
        %571 = vmatpush1.msra.mxu0 %v506
        %572 = vmatprep.subr.mxu0 0.0
        %573 = vmatpush1.msra.mxu0 %v507
        %574 = vmatprep.subr.mxu0 0.0
        %575 = vmatpush1.msra.mxu0 %v508
        %576 = vmatprep.subr.mxu0 0.0
        %577 = vmatpush1.msra.mxu0 %v509
        %578 = vmatprep.subr.mxu0 0.0
        %579 = vmatpush1.msra.mxu0 %v510
        %580 = vmatprep.subr.mxu0 0.0
        %581 = vmatpush1.msra.mxu0 %v511
        %582 = vmatprep.subr.mxu0 0.0
        %583 = vmatpush1.msra.mxu0 %v512
        %584 = vmatprep.mubr.f32.mxu0 %v480
        %585 = vmatmul.mubr.f32.gmra.mrb[0].mxu0 %v479
        %v586 = vpop.f32.mrb[0].mxu0
        %v587 = vadd.f32 %v518, %v586
        %v588 = vpop.f32.mrb[0].mxu0
        %589 = vdwg.mxu0
        %v590 = vld [vmem:[%s5] sm:$0xff]
        %v591 = vld [vmem:[%s5 + $0x8] sm:$0xff]
        %v592 = vld [vmem:[%s5 + $0x10] sm:$0xff]
        %v593 = vld [vmem:[%s5 + $0x18] sm:$0xff]
        %v594 = vld [vmem:[%s5 + $0x20] sm:$0xff]
        %v595 = vld [vmem:[%s5 + $0x28] sm:$0xff]
        %v596 = vld [vmem:[%s5 + $0x30] sm:$0xff]
        %v597 = vld [vmem:[%s5 + $0x38] sm:$0xff]
        %v598 = vld [vmem:[%s5 + $0x40] sm:$0xff]
        %v599 = vld [vmem:[%s5 + $0x48] sm:$0xff]
        %v600 = vld [vmem:[%s5 + $0x50] sm:$0xff]
        %v601 = vld [vmem:[%s5 + $0x58] sm:$0xff]
        %v602 = vld [vmem:[%s5 + $0x60] sm:$0xff]
        %v603 = vld [vmem:[%s5 + $0x68] sm:$0xff]
        %v604 = vld [vmem:[%s5 + $0x70] sm:$0xff]
        %v605 = vld [vmem:[%s5 + $0x78] sm:$0xff]
        %v606 = vld [vmem:[%s6] sm:$0x3]
        %v608 = vlaneseq
        %v609 = vshrl.u32 %v608, 7
        %v610 = vsub.s32 0, %v609
        %v611 = vrot.slane %v606, %v610
        %v612 = vlaneseq
        %v613 = vshrl.u32 %v612, 7
        %v614 = vsub.s32 1, %v613
        %v615 = vrot.slane %v606, %v614
        %vm618 = vcmask 523264
        %v620 = vsel %vm618, %v587, 0
        %622 = vmatprep.subr.mxu0 %v591
        %623 = vmatpush1.msra.mxu0 %v590
        %624 = vmatprep.subr.mxu0 %v593
        %625 = vmatpush1.msra.mxu0 %v592
        %626 = vmatprep.subr.mxu0 %v595
        %627 = vmatpush1.msra.mxu0 %v594
        %628 = vmatprep.subr.mxu0 %v597
        %629 = vmatpush1.msra.mxu0 %v596
        %630 = vmatprep.subr.mxu0 %v599
        %631 = vmatpush1.msra.mxu0 %v598
        %632 = vmatprep.subr.mxu0 %v601
        %633 = vmatpush1.msra.mxu0 %v600
        %634 = vmatprep.subr.mxu0 %v603
        %635 = vmatpush1.msra.mxu0 %v602
        %636 = vmatprep.subr.mxu0 %v605
        %637 = vmatpush1.msra.mxu0 %v604
        %638 = vmatprep.subr.mxu0 0.0
        %639 = vmatpush1.msra.mxu0 0.0
        %640 = vmatprep.subr.mxu0 0.0
        %641 = vmatpush1.msra.mxu0 0.0
        %642 = vmatprep.subr.mxu0 0.0
        %643 = vmatpush1.msra.mxu0 0.0
        %644 = vmatprep.subr.mxu0 0.0
        %645 = vmatpush1.msra.mxu0 0.0
        %646 = vmatprep.subr.mxu0 0.0
        %647 = vmatpush1.msra.mxu0 0.0
        %648 = vmatprep.subr.mxu0 0.0
        %649 = vmatpush1.msra.mxu0 0.0
        %650 = vmatprep.subr.mxu0 0.0
        %651 = vmatpush1.msra.mxu0 0.0
        %652 = vmatprep.subr.mxu0 0.0
        %653 = vmatpush1.msra.mxu0 0.0
        %654 = vmatprep.subr.mxu0 0.0
        %655 = vmatpush1.msra.mxu0 0.0
        %656 = vmatprep.subr.mxu0 0.0
        %657 = vmatpush1.msra.mxu0 0.0
        %658 = vmatprep.subr.mxu0 0.0
        %659 = vmatpush1.msra.mxu0 0.0
        %660 = vmatprep.subr.mxu0 0.0
        %661 = vmatpush1.msra.mxu0 0.0
        %662 = vmatprep.subr.mxu0 0.0
        %663 = vmatpush1.msra.mxu0 0.0
        %664 = vmatprep.subr.mxu0 0.0
        %665 = vmatpush1.msra.mxu0 0.0
        %666 = vmatprep.subr.mxu0 0.0
        %667 = vmatpush1.msra.mxu0 0.0
        %668 = vmatprep.subr.mxu0 0.0
        %669 = vmatpush1.msra.mxu0 0.0
        %670 = vmatprep.subr.mxu0 0.0
        %671 = vmatpush1.msra.mxu0 0.0
        %672 = vmatprep.subr.mxu0 0.0
        %673 = vmatpush1.msra.mxu0 0.0
        %674 = vmatprep.subr.mxu0 0.0
        %675 = vmatpush1.msra.mxu0 0.0
        %676 = vmatprep.subr.mxu0 0.0
        %677 = vmatpush1.msra.mxu0 0.0
        %678 = vmatprep.subr.mxu0 0.0
        %679 = vmatpush1.msra.mxu0 0.0
        %680 = vmatprep.subr.mxu0 0.0
        %681 = vmatpush1.msra.mxu0 0.0
        %682 = vmatprep.subr.mxu0 0.0
        %683 = vmatpush1.msra.mxu0 0.0
        %684 = vmatprep.subr.mxu0 0.0
        %685 = vmatpush1.msra.mxu0 0.0
        %686 = vmatprep.mubr.f32.mxu0 0.0
        %687 = vmatmul.mubr.f32.gmra.mrb[0].mxu0 %v620
        %v688 = vpop.f32.mrb[0].mxu0
        %v689 = vadd.f32 %v611, %v688
        %v690 = vpop.f32.mrb[0].mxu0
        %v691 = vadd.f32 %v615, %v690
        %692 = vdwg.mxu0
        %v693 = vmax.f32 %v689, 0.0
        %v694 = vmax.f32 %v691, 0.0
        %v695 = vld [vmem:[#allocation5] sm:$0xff]
        %v696 = vld [vmem:[#allocation5 + $0x8] sm:$0xff]
        %v697 = vld [vmem:[#allocation5 + $0x10] sm:$0xff]
        %v698 = vld [vmem:[#allocation5 + $0x18] sm:$0xff]
        %v699 = vld [vmem:[#allocation5 + $0x20] sm:$0xff]
        %v700 = vld [vmem:[#allocation5 + $0x28] sm:$0xff]
        %v701 = vld [vmem:[#allocation5 + $0x30] sm:$0xff]
        %v702 = vld [vmem:[#allocation5 + $0x38] sm:$0xff]
        %v703 = vld [vmem:[#allocation5 + $0x40] sm:$0xff]
        %v704 = vld [vmem:[#allocation5 + $0x48] sm:$0xff]
        %v705 = vld [vmem:[#allocation5 + $0x50] sm:$0xff]
        %v706 = vld [vmem:[#allocation5 + $0x58] sm:$0xff]
        %v707 = vld [vmem:[#allocation5 + $0x60] sm:$0xff]
        %v708 = vld [vmem:[#allocation5 + $0x68] sm:$0xff]
        %v709 = vld [vmem:[#allocation5 + $0x70] sm:$0xff]
        %v710 = vld [vmem:[#allocation5 + $0x78] sm:$0xff]
        %v711 = vld [vmem:[#allocation5 + $0x80] sm:$0xff]
        %v712 = vld [vmem:[#allocation5 + $0x88] sm:$0xff]
        %v713 = vld [vmem:[#allocation5 + $0x90] sm:$0xff]
        %v714 = vld [vmem:[#allocation5 + $0x98] sm:$0xff]
        %v715 = vld [vmem:[#allocation5 + $0xa0] sm:$0xff]
        %v716 = vld [vmem:[#allocation5 + $0xa8] sm:$0xff]
        %v717 = vld [vmem:[#allocation5 + $0xb0] sm:$0xff]
        %v718 = vld [vmem:[#allocation5 + $0xb8] sm:$0xff]
        %v719 = vld [vmem:[#allocation5 + $0xc0] sm:$0xff]
        %v720 = vld [vmem:[#allocation5 + $0xc8] sm:$0xff]
        %v721 = vld [vmem:[#allocation5 + $0xd0] sm:$0xff]
        %v722 = vld [vmem:[#allocation5 + $0xd8] sm:$0xff]
        %v723 = vld [vmem:[#allocation5 + $0xe0] sm:$0xff]
        %v724 = vld [vmem:[#allocation5 + $0xe8] sm:$0xff]
        %v725 = vld [vmem:[#allocation5 + $0xf0] sm:$0xff]
        %v726 = vld [vmem:[#allocation5 + $0xf8] sm:$0xff]
        %v727 = vld [vmem:[%s8] sm:$0x1]
        %v729 = vlaneseq
        %v730 = vshrl.u32 %v729, 7
        %v731 = vsub.s32 0, %v730
        %v732 = vrot.slane %v727, %v731
        %734 = vmatprep.subr.mxu0 0.0
        %735 = vmatpush1.msra.mxu0 %v695
        %736 = vmatprep.subr.mxu0 0.0
        %737 = vmatpush1.msra.mxu0 %v696
        %738 = vmatprep.subr.mxu0 0.0
        %739 = vmatpush1.msra.mxu0 %v697
        %740 = vmatprep.subr.mxu0 0.0
        %741 = vmatpush1.msra.mxu0 %v698
        %742 = vmatprep.subr.mxu0 0.0
        %743 = vmatpush1.msra.mxu0 %v699
        %744 = vmatprep.subr.mxu0 0.0
        %745 = vmatpush1.msra.mxu0 %v700
        %746 = vmatprep.subr.mxu0 0.0
        %747 = vmatpush1.msra.mxu0 %v701
        %748 = vmatprep.subr.mxu0 0.0
        %749 = vmatpush1.msra.mxu0 %v702
        %750 = vmatprep.subr.mxu0 0.0
        %751 = vmatpush1.msra.mxu0 %v703
        %752 = vmatprep.subr.mxu0 0.0
        %753 = vmatpush1.msra.mxu0 %v704
        %754 = vmatprep.subr.mxu0 0.0
        %755 = vmatpush1.msra.mxu0 %v705
        %756 = vmatprep.subr.mxu0 0.0
        %757 = vmatpush1.msra.mxu0 %v706
        %758 = vmatprep.subr.mxu0 0.0
        %759 = vmatpush1.msra.mxu0 %v707
        %760 = vmatprep.subr.mxu0 0.0
        %761 = vmatpush1.msra.mxu0 %v708
        %762 = vmatprep.subr.mxu0 0.0
        %763 = vmatpush1.msra.mxu0 %v709
        %764 = vmatprep.subr.mxu0 0.0
        %765 = vmatpush1.msra.mxu0 %v710
        %766 = vmatprep.subr.mxu0 0.0
        %767 = vmatpush1.msra.mxu0 %v711
        %768 = vmatprep.subr.mxu0 0.0
        %769 = vmatpush1.msra.mxu0 %v712
        %770 = vmatprep.subr.mxu0 0.0
        %771 = vmatpush1.msra.mxu0 %v713
        %772 = vmatprep.subr.mxu0 0.0
        %773 = vmatpush1.msra.mxu0 %v714
        %774 = vmatprep.subr.mxu0 0.0
        %775 = vmatpush1.msra.mxu0 %v715
        %776 = vmatprep.subr.mxu0 0.0
        %777 = vmatpush1.msra.mxu0 %v716
        %778 = vmatprep.subr.mxu0 0.0
        %779 = vmatpush1.msra.mxu0 %v717
        %780 = vmatprep.subr.mxu0 0.0
        %781 = vmatpush1.msra.mxu0 %v718
        %782 = vmatprep.subr.mxu0 0.0
        %783 = vmatpush1.msra.mxu0 %v719
        %784 = vmatprep.subr.mxu0 0.0
        %785 = vmatpush1.msra.mxu0 %v720
        %786 = vmatprep.subr.mxu0 0.0
        %787 = vmatpush1.msra.mxu0 %v721
        %788 = vmatprep.subr.mxu0 0.0
        %789 = vmatpush1.msra.mxu0 %v722
        %790 = vmatprep.subr.mxu0 0.0
        %791 = vmatpush1.msra.mxu0 %v723
        %792 = vmatprep.subr.mxu0 0.0
        %793 = vmatpush1.msra.mxu0 %v724
        %794 = vmatprep.subr.mxu0 0.0
        %795 = vmatpush1.msra.mxu0 %v725
        %796 = vmatprep.subr.mxu0 0.0
        %797 = vmatpush1.msra.mxu0 %v726
        %798 = vmatprep.mubr.f32.mxu0 %v694
        %799 = vmatmul.mubr.f32.gmra.mrb[0].mxu0 %v693
        %v800 = vpop.f32.mrb[0].mxu0
        %v801 = vadd.f32 %v732, %v800
        %v802 = vpop.f32.mrb[0].mxu0
        %803 = vdwg.mxu0
        %804 = vst [vmem:[%s362] sm:$0xff] %v801
        %s805 = sand.u32 %s229, 1
        %s806 = scalar_lea.sflag [#allocation4], %s805
        %s807 = sand.u32 %s229, 1
        %s808 = smul.addr %s807, 8
        %s809 = scalar_lea.vmem [#allocation7], %s808
        // Predicated region
        $region65: #{tpu_custom_call.1} parent=55 // pred_check
          %p810 = pneg %p239
        $region66: #{tpu_custom_call.1} parent=55 // pred_check_branch
          %812 = sbr.rel (%p810) target = $region68
        $region67: #{tpu_custom_call.1} parent=55 // pred_region
          %s814 = ssub.s32 128, 128
          %815 = vsyncadd %s806, %s814
          %s816 = smul.addr %s27, 128
          %s817 = scalar_lea.hbm %s9, %s816
          %s819 = sshll.u32 %s809, 4
          %s820 = int_to_ptr.vmem [resolvable:$true] %s819
          %822 = dma.vmem_to_hbm [thread:$0]  %s820, 128, %s817, %s806
        $region68: #{tpu_custom_call.1} parent=55 // pred_fallthru
          _
      $region56: #{tpu_custom_call.1} parent=5 // pred_fallthru
        _
      %p823 = scmp.le.s32.totalorder 2, %s22
      // Predicated region
      $region69: #{tpu_custom_call.1} parent=5 // pred_check
        %p824 = pneg %p823
      $region70: #{tpu_custom_call.1} parent=5 // pred_check_branch
        %826 = sbr.rel (%p824) target = $region72
      $region71: #{tpu_custom_call.1} parent=5 // pred_region
        %s827 = ssub.s32 %s22, 2
        // Predicated region
        $region73: #{tpu_custom_call.1} parent=71 // pred_check
          %p828 = pneg %p245
        $region74: #{tpu_custom_call.1} parent=71 // pred_check_branch
          %830 = sbr.rel (%p828) target = $region76
        $region75: #{tpu_custom_call.1} parent=71 // pred_region
          %s831 = sand.u32 %s230, 1
          %s832 = scalar_lea.sflag [#allocation4], %s831
          %s833 = sand.u32 %s230, 1
          %s834 = smul.addr %s833, 8
          %s835 = scalar_lea.vmem [#allocation7], %s834
          %836 = dma.done %s832, 128
        $region76: #{tpu_custom_call.1} parent=71 // pred_fallthru
          _
      $region72: #{tpu_custom_call.1} parent=5 // pred_fallthru
        _
    $region6: #{tpu_custom_call.1} parent=1 // loop_footer
      %s26 = sadd.s32 1, %s22
    $region7: #{tpu_custom_call.1} parent=1 // loop_footer_branch
      %21 = sbr.rel target = $region3
    $region8: #{tpu_custom_call.1} parent=1 // loop_exit
      _
    %837 = vsyncpa [#allocation3], 1
    %s838 = scalar_lea.sflag [#allocation3], 1
    %839 = vsyncpa %s838, 1
    %840 = vsyncpa [#allocation6], 1
    %841 = vsyncpa [#allocation4], 1
    %s842 = scalar_lea.sflag [#allocation4], 1
    %843 = vsyncpa %s842, 1

// kernel: tpu_custom_call.1
$region0: #{tpu_custom_call.1}
  #allocation0 [shape = 'u32[]', space=smem, size = 0x4, offset = 0x4, fixed_abs, tag = 'smem constant byte address 0x4 - core index']
  #allocation1 [shape = 'u32[144,128]{1,0:T(1,128)}', space=vmem, size = 0x12000, scoped, tag = 'internal scratch']
  %s0 = inlined_call_operand.hbm [shape: f32[32,128], index: 0, kind: input, shape index: {}]
  %s1 = inlined_call_operand.vmem [shape: f32[128,256], index: 1, kind: input, shape index: {}]
  %s2 = inlined_call_operand.vmem [shape: f32[1,256], index: 2, kind: input, shape index: {}]
  %s3 = inlined_call_operand.vmem [shape: f32[256,64], index: 3, kind: input, shape index: {}]
  %s4 = inlined_call_operand.vmem [shape: f32[1,64], index: 4, kind: input, shape index: {}]
  %s5 = inlined_call_operand.vmem [shape: f32[64,256], index: 5, kind: input, shape index: {}]
  %s6 = inlined_call_operand.vmem [shape: f32[1,256], index: 6, kind: input, shape index: {}]
  %s7 = inlined_call_operand.hbm [shape: f32[256,128], index: 7, kind: input, shape index: {}]
  %s8 = inlined_call_operand.vmem [shape: f32[1,128], index: 8, kind: input, shape index: {}]
  %s9 = inlined_call_operand.hbm [shape: f32[32,128], index: 9, kind: output, shape index: {}]
  %s10 = sld [smem:[#allocation0]]
  $region77: #{tpu_custom_call.1} parent=0
    _
  %s12 = ssub.s32 1, %s10
  %s13 = scalar_select 0, %s12, %s10
  $region1: #{tpu_custom_call.1} parent=0
    #allocation2 [shape = 'u8[8192]{0}', space=vmem, size = 0x2000, scoped, tag = 'input window, operand 0']
    #allocation3 [shape = 's32[2]{0}', space=sflag, size = 0x8, scoped, tag = 'scoped memory for tpu_custom_call.1']
    #allocation4 [shape = 's32[2]{0}', space=sflag, size = 0x8, scoped, tag = 'scoped memory for tpu_custom_call.1']
    #allocation5 [shape = 'u8[131072]{0}', space=vmem, size = 0x20000, scoped, tag = 'input window, operand 7, single buffered']
    #allocation6 [shape = 's32[1]{0}', space=sflag, size = 0x4, scoped, tag = 'scoped memory for tpu_custom_call.1']
    #allocation7 [shape = 'u8[8192]{0}', space=vmem, size = 0x2000, scoped, tag = 'output window, operand 0']
    %14 = vsyncpa [#allocation3], 0
    %s15 = scalar_lea.sflag [#allocation3], 1
    %16 = vsyncpa %s15, 0
    %17 = vsyncpa [#allocation6], 0
    %18 = vsyncpa [#allocation4], 0
    %s19 = scalar_lea.sflag [#allocation4], 1
    %20 = vsyncpa %s19, 0
    loop: start=0, step=1, limit=6
    $region2: #{tpu_custom_call.1} parent=1 // loop_pre_header
      _
    $region3: #{tpu_custom_call.1} parent=1 // loop_header
      %s22 = sphi 0, %s26
      %p23 = scmp.ge.s32.totalorder %s22, 6
      %s32 = sphi 0, %s34
      %s35 = sphi 0, %s32
      %s36 = sphi 0, %s35
      %s52 = sphi 0, %s36
      %s56 = sphi 0, %s56
      %s58 = sphi 0, %s56
      %s59 = sphi 0, %s58
      %s73 = sphi 0, %s59
      %s77 = sphi 0, %s77
      %s79 = sphi 0, %s77
      %s80 = sphi 0, %s79
      %s94 = sphi 0, %s80
      %s98 = sphi 0, %s98
      %s100 = sphi 0, %s98
      %s101 = sphi 0, %s100
      %s115 = sphi 0, %s101
      %s119 = sphi 0, %s119
      %s121 = sphi 0, %s119
      %s122 = sphi 0, %s121
      %s136 = sphi 0, %s122
      %s140 = sphi 0, %s140
      %s142 = sphi 0, %s140
      %s143 = sphi 0, %s142
      %s157 = sphi 0, %s143
      %s161 = sphi 0, %s161
      %s163 = sphi 0, %s161
      %s164 = sphi 0, %s163
      %s178 = sphi 0, %s164
      %s182 = sphi 0, %s182
      %s184 = sphi 0, %s182
      %s185 = sphi 0, %s184
      %s199 = sphi 0, %s185
      %s203 = sphi 0, %s203
      %s205 = sphi 0, %s203
      %s206 = sphi 0, %s205
      %s220 = sphi 0, %s206
      %s226 = sphi 0, %s228
      %s229 = sphi 0, %s226
      %s230 = sphi 0, %s229
      %s246 = sphi 0, %s230
    $region4: #{tpu_custom_call.1} parent=1 // loop_header_branch
      %25 = sbr.rel (%p23) target = $region8
    $region5: #{tpu_custom_call.1} parent=1 // loop_body
      %s27 = ssub.s32 %s22, 1
      %s28 = ssub.s32 %s22, 2
      %s29 = sadd.s32 %s22, 1
      %s30 = ssub.s32 %s22, %s29
      %p31 = scmp.eq.s32.totalorder %s30, 0
      %s33 = sadd.s32 %s32, 1
      %s34 = scalar_select %p31, %s32, %s33
      %p37 = pneg %p31
      %p38 = scmp.eq.s32.totalorder %s22, 3
      %p39 = por %p37, %p38
      %p40 = scmp.ne.s32.totalorder %s32, %s35
      %p41 = scmp.eq.s32.totalorder %s22, 0
      %p42 = por %p40, %p41
      %p43 = scmp.ne.s32.totalorder %s32, %s35
      %p44 = scmp.eq.s32.totalorder %s27, 3
      %p45 = por %p43, %p44
      %p46 = scmp.ne.s32.totalorder %s35, %s36
      %p47 = scmp.eq.s32.totalorder %s27, 0
      %p48 = por %p46, %p47
      %p49 = scmp.ne.s32.totalorder %s35, %s36
      %p50 = scmp.eq.s32.totalorder %s28, 3
      %p51 = por %p49, %p50
      %p53 = scmp.ne.s32.totalorder %s36, %s52
      %p54 = scmp.eq.s32.totalorder %s28, 0
      %p55 = por %p53, %p54
      %s57 = sadd.s32 %s56, 1
      %p60 = scmp.eq.s32.totalorder %s22, 3
      %p61 = scmp.ne.s32.totalorder %s56, %s58
      %p62 = scmp.eq.s32.totalorder %s22, 0
      %p63 = por %p61, %p62
      %p64 = scmp.ne.s32.totalorder %s56, %s58
      %p65 = scmp.eq.s32.totalorder %s27, 3
      %p66 = por %p64, %p65
      %p67 = scmp.ne.s32.totalorder %s58, %s59
      %p68 = scmp.eq.s32.totalorder %s27, 0
      %p69 = por %p67, %p68
      %p70 = scmp.ne.s32.totalorder %s58, %s59
      %p71 = scmp.eq.s32.totalorder %s28, 3
      %p72 = por %p70, %p71
      %p74 = scmp.ne.s32.totalorder %s59, %s73
      %p75 = scmp.eq.s32.totalorder %s28, 0
      %p76 = por %p74, %p75
      %s78 = sadd.s32 %s77, 1
      %p81 = scmp.eq.s32.totalorder %s22, 3
      %p82 = scmp.ne.s32.totalorder %s77, %s79
      %p83 = scmp.eq.s32.totalorder %s22, 0
      %p84 = por %p82, %p83
      %p85 = scmp.ne.s32.totalorder %s77, %s79
      %p86 = scmp.eq.s32.totalorder %s27, 3
      %p87 = por %p85, %p86
      %p88 = scmp.ne.s32.totalorder %s79, %s80
      %p89 = scmp.eq.s32.totalorder %s27, 0
      %p90 = por %p88, %p89
      %p91 = scmp.ne.s32.totalorder %s79, %s80
      %p92 = scmp.eq.s32.totalorder %s28, 3
      %p93 = por %p91, %p92
      %p95 = scmp.ne.s32.totalorder %s80, %s94
      %p96 = scmp.eq.s32.totalorder %s28, 0
      %p97 = por %p95, %p96
      %s99 = sadd.s32 %s98, 1
      %p102 = scmp.eq.s32.totalorder %s22, 3
      %p103 = scmp.ne.s32.totalorder %s98, %s100
      %p104 = scmp.eq.s32.totalorder %s22, 0
      %p105 = por %p103, %p104
      %p106 = scmp.ne.s32.totalorder %s98, %s100
      %p107 = scmp.eq.s32.totalorder %s27, 3
      %p108 = por %p106, %p107
      %p109 = scmp.ne.s32.totalorder %s100, %s101
      %p110 = scmp.eq.s32.totalorder %s27, 0
      %p111 = por %p109, %p110
      %p112 = scmp.ne.s32.totalorder %s100, %s101
      %p113 = scmp.eq.s32.totalorder %s28, 3
      %p114 = por %p112, %p113
      %p116 = scmp.ne.s32.totalorder %s101, %s115
      %p117 = scmp.eq.s32.totalorder %s28, 0
      %p118 = por %p116, %p117
      %s120 = sadd.s32 %s119, 1
      %p123 = scmp.eq.s32.totalorder %s22, 3
      %p124 = scmp.ne.s32.totalorder %s119, %s121
      %p125 = scmp.eq.s32.totalorder %s22, 0
      %p126 = por %p124, %p125
      %p127 = scmp.ne.s32.totalorder %s119, %s121
      %p128 = scmp.eq.s32.totalorder %s27, 3
      %p129 = por %p127, %p128
      %p130 = scmp.ne.s32.totalorder %s121, %s122
      %p131 = scmp.eq.s32.totalorder %s27, 0
      %p132 = por %p130, %p131
      %p133 = scmp.ne.s32.totalorder %s121, %s122
      %p134 = scmp.eq.s32.totalorder %s28, 3
      %p135 = por %p133, %p134
      %p137 = scmp.ne.s32.totalorder %s122, %s136
      %p138 = scmp.eq.s32.totalorder %s28, 0
      %p139 = por %p137, %p138
      %s141 = sadd.s32 %s140, 1
      %p144 = scmp.eq.s32.totalorder %s22, 3
      %p145 = scmp.ne.s32.totalorder %s140, %s142
      %p146 = scmp.eq.s32.totalorder %s22, 0
      %p147 = por %p145, %p146
      %p148 = scmp.ne.s32.totalorder %s140, %s142
      %p149 = scmp.eq.s32.totalorder %s27, 3
      %p150 = por %p148, %p149
      %p151 = scmp.ne.s32.totalorder %s142, %s143
      %p152 = scmp.eq.s32.totalorder %s27, 0
      %p153 = por %p151, %p152
      %p154 = scmp.ne.s32.totalorder %s142, %s143
      %p155 = scmp.eq.s32.totalorder %s28, 3
      %p156 = por %p154, %p155
      %p158 = scmp.ne.s32.totalorder %s143, %s157
      %p159 = scmp.eq.s32.totalorder %s28, 0
      %p160 = por %p158, %p159
      %s162 = sadd.s32 %s161, 1
      %p165 = scmp.eq.s32.totalorder %s22, 3
      %p166 = scmp.ne.s32.totalorder %s161, %s163
      %p167 = scmp.eq.s32.totalorder %s22, 0
      %p168 = por %p166, %p167
      %p169 = scmp.ne.s32.totalorder %s161, %s163
      %p170 = scmp.eq.s32.totalorder %s27, 3
      %p171 = por %p169, %p170
      %p172 = scmp.ne.s32.totalorder %s163, %s164
      %p173 = scmp.eq.s32.totalorder %s27, 0
      %p174 = por %p172, %p173
      %p175 = scmp.ne.s32.totalorder %s163, %s164
      %p176 = scmp.eq.s32.totalorder %s28, 3
      %p177 = por %p175, %p176
      %p179 = scmp.ne.s32.totalorder %s164, %s178
      %p180 = scmp.eq.s32.totalorder %s28, 0
      %p181 = por %p179, %p180
      %s183 = sadd.s32 %s182, 1
      %p186 = scmp.eq.s32.totalorder %s22, 3
      %p187 = scmp.ne.s32.totalorder %s182, %s184
      %p188 = scmp.eq.s32.totalorder %s22, 0
      %p189 = por %p187, %p188
      %p190 = scmp.ne.s32.totalorder %s182, %s184
      %p191 = scmp.eq.s32.totalorder %s27, 3
      %p192 = por %p190, %p191
      %p193 = scmp.ne.s32.totalorder %s184, %s185
      %p194 = scmp.eq.s32.totalorder %s27, 0
      %p195 = por %p193, %p194
      %p196 = scmp.ne.s32.totalorder %s184, %s185
      %p197 = scmp.eq.s32.totalorder %s28, 3
      %p198 = por %p196, %p197
      %p200 = scmp.ne.s32.totalorder %s185, %s199
      %p201 = scmp.eq.s32.totalorder %s28, 0
      %p202 = por %p200, %p201
      %s204 = sadd.s32 %s203, 1
      %p207 = scmp.eq.s32.totalorder %s22, 3
      %p208 = scmp.ne.s32.totalorder %s203, %s205
      %p209 = scmp.eq.s32.totalorder %s22, 0
      %p210 = por %p208, %p209
      %p211 = scmp.ne.s32.totalorder %s203, %s205
      %p212 = scmp.eq.s32.totalorder %s27, 3
      %p213 = por %p211, %p212
      %p214 = scmp.ne.s32.totalorder %s205, %s206
      %p215 = scmp.eq.s32.totalorder %s27, 0
      %p216 = por %p214, %p215
      %p217 = scmp.ne.s32.totalorder %s205, %s206
      %p218 = scmp.eq.s32.totalorder %s28, 3
      %p219 = por %p217, %p218
      %p221 = scmp.ne.s32.totalorder %s206, %s220
      %p222 = scmp.eq.s32.totalorder %s28, 0
      %p223 = por %p221, %p222
      %s224 = ssub.s32 %s22, %s29
      %p225 = scmp.eq.s32.totalorder %s224, 0
      %s227 = sadd.s32 %s226, 1
      %s228 = scalar_select %p225, %s226, %s227
      %p231 = pneg %p225
      %p232 = scmp.eq.s32.totalorder %s22, 3
      %p233 = por %p231, %p232
      %p234 = scmp.ne.s32.totalorder %s226, %s229
      %p235 = scmp.eq.s32.totalorder %s22, 0
      %p236 = por %p234, %p235
      %p237 = scmp.ne.s32.totalorder %s226, %s229
      %p238 = scmp.eq.s32.totalorder %s27, 3
      %p239 = por %p237, %p238
      %p240 = scmp.ne.s32.totalorder %s229, %s230
      %p241 = scmp.eq.s32.totalorder %s27, 0
      %p242 = por %p240, %p241
      %p243 = scmp.ne.s32.totalorder %s229, %s230
      %p244 = scmp.eq.s32.totalorder %s28, 3
      %p245 = por %p243, %p244
      %p247 = scmp.ne.s32.totalorder %s230, %s246
      %p248 = scmp.eq.s32.totalorder %s28, 0
      %p249 = por %p247, %p248
      %p250 = scmp.le.s32.totalorder 1, %s22
      %p251 = scmp.lt.s32.totalorder %s22, 5
      %p252 = pnand %p250, %p251
      %p253 = pneg %p252
      // Predicated region
      $region9: #{tpu_custom_call.1} parent=5 // pred_check
        _
      $region10: #{tpu_custom_call.1} parent=5 // pred_check_branch
        %255 = sbr.rel (%p252) target = $region12
      $region11: #{tpu_custom_call.1} parent=5 // pred_region
        %s256 = ssub.s32 %s22, 1
        // Predicated region
        $region13: #{tpu_custom_call.1} parent=11 // pred_check
          %p257 = pneg %p69
        $region14: #{tpu_custom_call.1} parent=11 // pred_check_branch
          %259 = sbr.rel (%p257) target = $region16
        $region15: #{tpu_custom_call.1} parent=11 // pred_region
          _
        $region16: #{tpu_custom_call.1} parent=11 // pred_fallthru
          _
        // Predicated region
        $region17: #{tpu_custom_call.1} parent=11 // pred_check
          %p260 = pneg %p90
        $region18: #{tpu_custom_call.1} parent=11 // pred_check_branch
          %262 = sbr.rel (%p260) target = $region20
        $region19: #{tpu_custom_call.1} parent=11 // pred_region
          _
        $region20: #{tpu_custom_call.1} parent=11 // pred_fallthru
          _
        // Predicated region
        $region21: #{tpu_custom_call.1} parent=11 // pred_check
          %p263 = pneg %p111
        $region22: #{tpu_custom_call.1} parent=11 // pred_check_branch
          %265 = sbr.rel (%p263) target = $region24
        $region23: #{tpu_custom_call.1} parent=11 // pred_region
          _
        $region24: #{tpu_custom_call.1} parent=11 // pred_fallthru
          _
        // Predicated region
        $region25: #{tpu_custom_call.1} parent=11 // pred_check
          %p266 = pneg %p132
        $region26: #{tpu_custom_call.1} parent=11 // pred_check_branch
          %268 = sbr.rel (%p266) target = $region28
        $region27: #{tpu_custom_call.1} parent=11 // pred_region
          _
        $region28: #{tpu_custom_call.1} parent=11 // pred_fallthru
          _
        // Predicated region
        $region29: #{tpu_custom_call.1} parent=11 // pred_check
          %p269 = pneg %p153
        $region30: #{tpu_custom_call.1} parent=11 // pred_check_branch
          %271 = sbr.rel (%p269) target = $region32
        $region31: #{tpu_custom_call.1} parent=11 // pred_region
          _
        $region32: #{tpu_custom_call.1} parent=11 // pred_fallthru
          _
        // Predicated region
        $region33: #{tpu_custom_call.1} parent=11 // pred_check
          %p272 = pneg %p174
        $region34: #{tpu_custom_call.1} parent=11 // pred_check_branch
          %274 = sbr.rel (%p272) target = $region36
        $region35: #{tpu_custom_call.1} parent=11 // pred_region
          _
        $region36: #{tpu_custom_call.1} parent=11 // pred_fallthru
          _
        // Predicated region
        $region37: #{tpu_custom_call.1} parent=11 // pred_check
          %p275 = pneg %p195
        $region38: #{tpu_custom_call.1} parent=11 // pred_check_branch
          %277 = sbr.rel (%p275) target = $region40
        $region39: #{tpu_custom_call.1} parent=11 // pred_region
          %s279 = ssub.s32 4096, 4096
          %280 = vsyncadd [#allocation6], %s279
          %s281 = sshll.u32 [#allocation5], 4
          %s282 = int_to_ptr.vmem [resolvable:$true] %s281
          %287 = dma.hbm_to_vmem [thread:$0]  %s7, 4096, %s282, [#allocation6], 128, 128, 8
        $region40: #{tpu_custom_call.1} parent=11 // pred_fallthru
          _
        // Predicated region
        $region41: #{tpu_custom_call.1} parent=11 // pred_check
          %p288 = pneg %p216
        $region42: #{tpu_custom_call.1} parent=11 // pred_check_branch
          %290 = sbr.rel (%p288) target = $region44
        $region43: #{tpu_custom_call.1} parent=11 // pred_region
          _
        $region44: #{tpu_custom_call.1} parent=11 // pred_fallthru
          _
      $region12: #{tpu_custom_call.1} parent=5 // pred_fallthru
        _
      %p291 = scmp.lt.s32.totalorder %s22, 4
      // Predicated region
      $region45: #{tpu_custom_call.1} parent=5 // pred_check
        %p292 = pneg %p291
      $region46: #{tpu_custom_call.1} parent=5 // pred_check_branch
        %294 = sbr.rel (%p292) target = $region48
      $region47: #{tpu_custom_call.1} parent=5 // pred_region
        // Predicated region
        $region49: #{tpu_custom_call.1} parent=47 // pred_check
          %p295 = pneg %p42
        $region50: #{tpu_custom_call.1} parent=47 // pred_check_branch
          %297 = sbr.rel (%p295) target = $region52
        $region51: #{tpu_custom_call.1} parent=47 // pred_region
          %s298 = sand.u32 %s32, 1
          %s299 = scalar_lea.sflag [#allocation3], %s298
          %s300 = sand.u32 %s32, 1
          %s301 = smul.addr %s300, 8
          %s302 = scalar_lea.vmem [#allocation2], %s301
          %s304 = ssub.s32 128, 128
          %305 = vsyncadd %s299, %s304
          %s306 = smul.addr %s22, 128
          %s307 = scalar_lea.hbm %s0, %s306
          %s309 = sshll.u32 %s302, 4
          %s310 = int_to_ptr.vmem [resolvable:$true] %s309
          %312 = dma.hbm_to_vmem [thread:$0]  %s307, 128, %s310, %s299
        $region52: #{tpu_custom_call.1} parent=47 // pred_fallthru
          _
      $region48: #{tpu_custom_call.1} parent=5 // pred_fallthru
        _
      %p313 = scmp.le.s32.totalorder 1, %s22
      %p314 = scmp.lt.s32.totalorder %s22, 5
      %p315 = pnand %p313, %p314
      %p316 = pneg %p315
      // Predicated region
      $region53: #{tpu_custom_call.1} parent=5 // pred_check
        _
      $region54: #{tpu_custom_call.1} parent=5 // pred_check_branch
        %318 = sbr.rel (%p315) target = $region56
      $region55: #{tpu_custom_call.1} parent=5 // pred_region
        %s319 = ssub.s32 %s22, 1
        %s320 = sand.u32 %s35, 1
        %s321 = scalar_lea.sflag [#allocation3], %s320
        %s322 = sand.u32 %s35, 1
        %s323 = smul.addr %s322, 8
        %s324 = scalar_lea.vmem [#allocation2], %s323
        // Predicated region
        $region57: #{tpu_custom_call.1} parent=55 // pred_check
          %p325 = pneg %p48
        $region58: #{tpu_custom_call.1} parent=55 // pred_check_branch
          %327 = sbr.rel (%p325) target = $region60
        $region59: #{tpu_custom_call.1} parent=55 // pred_region
          %328 = dma.done %s321, 128
        $region60: #{tpu_custom_call.1} parent=55 // pred_fallthru
          _
        // Predicated region
        $region61: #{tpu_custom_call.1} parent=55 // pred_check
          %p329 = pneg %p195
        $region62: #{tpu_custom_call.1} parent=55 // pred_check_branch
          %331 = sbr.rel (%p329) target = $region64
        $region63: #{tpu_custom_call.1} parent=55 // pred_region
          %332 = dma.done [#allocation6], 4096
        $region64: #{tpu_custom_call.1} parent=55 // pred_fallthru
          _
        %s333 = sand.u32 %s35, 1
        %s334 = scalar_lea.sflag [#allocation3], %s333
        %s335 = sand.u32 %s35, 1
        %s336 = smul.addr %s335, 8
        %s337 = scalar_lea.vmem [#allocation2], %s336
        %p338 = pneg %p48
        %p339 = pneg %p45
        %p340 = pneg %p69
        %p341 = pneg %p66
        %p342 = pneg %p90
        %p343 = pneg %p87
        %p344 = pneg %p111
        %p345 = pneg %p108
        %p346 = pneg %p132
        %p347 = pneg %p129
        %p348 = pneg %p153
        %p349 = pneg %p150
        %p350 = pneg %p174
        %p351 = pneg %p171
        %p352 = pneg %p195
        %p353 = pneg %p192
        %p354 = pneg %p216
        %p355 = pneg %p213
        %p356 = pneg %p242
        %p357 = pneg %p239
        %s358 = sand.u32 %s229, 1
        %s359 = scalar_lea.sflag [#allocation4], %s358
        %s360 = sand.u32 %s229, 1
        %s361 = smul.addr %s360, 8
        %s362 = scalar_lea.vmem [#allocation7], %s361
        %v363 = vld [vmem:[%s324] sm:$0xff]
        %v364 = vld [vmem:[%s1] sm:$0xff]
        %v365 = vld [vmem:[%s1 + $0x8] sm:$0xff]
        %v366 = vld [vmem:[%s1 + $0x10] sm:$0xff]
        %v367 = vld [vmem:[%s1 + $0x18] sm:$0xff]
        %v368 = vld [vmem:[%s1 + $0x20] sm:$0xff]
        %v369 = vld [vmem:[%s1 + $0x28] sm:$0xff]
        %v370 = vld [vmem:[%s1 + $0x30] sm:$0xff]
        %v371 = vld [vmem:[%s1 + $0x38] sm:$0xff]
        %v372 = vld [vmem:[%s1 + $0x40] sm:$0xff]
        %v373 = vld [vmem:[%s1 + $0x48] sm:$0xff]
        %v374 = vld [vmem:[%s1 + $0x50] sm:$0xff]
        %v375 = vld [vmem:[%s1 + $0x58] sm:$0xff]
        %v376 = vld [vmem:[%s1 + $0x60] sm:$0xff]
        %v377 = vld [vmem:[%s1 + $0x68] sm:$0xff]
        %v378 = vld [vmem:[%s1 + $0x70] sm:$0xff]
        %v379 = vld [vmem:[%s1 + $0x78] sm:$0xff]
        %v380 = vld [vmem:[%s1 + $0x80] sm:$0xff]
        %v381 = vld [vmem:[%s1 + $0x88] sm:$0xff]
        %v382 = vld [vmem:[%s1 + $0x90] sm:$0xff]
        %v383 = vld [vmem:[%s1 + $0x98] sm:$0xff]
        %v384 = vld [vmem:[%s1 + $0xa0] sm:$0xff]
        %v385 = vld [vmem:[%s1 + $0xa8] sm:$0xff]
        %v386 = vld [vmem:[%s1 + $0xb0] sm:$0xff]
        %v387 = vld [vmem:[%s1 + $0xb8] sm:$0xff]
        %v388 = vld [vmem:[%s1 + $0xc0] sm:$0xff]
        %v389 = vld [vmem:[%s1 + $0xc8] sm:$0xff]
        %v390 = vld [vmem:[%s1 + $0xd0] sm:$0xff]
        %v391 = vld [vmem:[%s1 + $0xd8] sm:$0xff]
        %v392 = vld [vmem:[%s1 + $0xe0] sm:$0xff]
        %v393 = vld [vmem:[%s1 + $0xe8] sm:$0xff]
        %v394 = vld [vmem:[%s1 + $0xf0] sm:$0xff]
        %v395 = vld [vmem:[%s1 + $0xf8] sm:$0xff]
        %v396 = vld [vmem:[%s2] sm:$0x3]
        %v398 = vlaneseq
        %v399 = vshrl.u32 %v398, 7
        %v400 = vsub.s32 0, %v399
        %v401 = vrot.slane %v396, %v400
        %v402 = vlaneseq
        %v403 = vshrl.u32 %v402, 7
        %v404 = vsub.s32 1, %v403
        %v405 = vrot.slane %v396, %v404
        %408 = vmatprep.subr.mxu0 %v365
        %409 = vmatpush1.msra.mxu0 %v364
        %410 = vmatprep.subr.mxu0 %v367
        %411 = vmatpush1.msra.mxu0 %v366
        %412 = vmatprep.subr.mxu0 %v369
        %413 = vmatpush1.msra.mxu0 %v368
        %414 = vmatprep.subr.mxu0 %v371
        %415 = vmatpush1.msra.mxu0 %v370
        %416 = vmatprep.subr.mxu0 %v373
        %417 = vmatpush1.msra.mxu0 %v372
        %418 = vmatprep.subr.mxu0 %v375
        %419 = vmatpush1.msra.mxu0 %v374
        %420 = vmatprep.subr.mxu0 %v377
        %421 = vmatpush1.msra.mxu0 %v376
        %422 = vmatprep.subr.mxu0 %v379
        %423 = vmatpush1.msra.mxu0 %v378
        %424 = vmatprep.subr.mxu0 %v381
        %425 = vmatpush1.msra.mxu0 %v380
        %426 = vmatprep.subr.mxu0 %v383
        %427 = vmatpush1.msra.mxu0 %v382
        %428 = vmatprep.subr.mxu0 %v385
        %429 = vmatpush1.msra.mxu0 %v384
        %430 = vmatprep.subr.mxu0 %v387
        %431 = vmatpush1.msra.mxu0 %v386
        %432 = vmatprep.subr.mxu0 %v389
        %433 = vmatpush1.msra.mxu0 %v388
        %434 = vmatprep.subr.mxu0 %v391
        %435 = vmatpush1.msra.mxu0 %v390
        %436 = vmatprep.subr.mxu0 %v393
        %437 = vmatpush1.msra.mxu0 %v392
        %438 = vmatprep.subr.mxu0 %v395
        %439 = vmatpush1.msra.mxu0 %v394
        %440 = vmatprep.subr.mxu0 0.0
        %441 = vmatpush1.msra.mxu0 0.0
        %442 = vmatprep.subr.mxu0 0.0
        %443 = vmatpush1.msra.mxu0 0.0
        %444 = vmatprep.subr.mxu0 0.0
        %445 = vmatpush1.msra.mxu0 0.0
        %446 = vmatprep.subr.mxu0 0.0
        %447 = vmatpush1.msra.mxu0 0.0
        %448 = vmatprep.subr.mxu0 0.0
        %449 = vmatpush1.msra.mxu0 0.0
        %450 = vmatprep.subr.mxu0 0.0
        %451 = vmatpush1.msra.mxu0 0.0
        %452 = vmatprep.subr.mxu0 0.0
        %453 = vmatpush1.msra.mxu0 0.0
        %454 = vmatprep.subr.mxu0 0.0
        %455 = vmatpush1.msra.mxu0 0.0
        %456 = vmatprep.subr.mxu0 0.0
        %457 = vmatpush1.msra.mxu0 0.0
        %458 = vmatprep.subr.mxu0 0.0
        %459 = vmatpush1.msra.mxu0 0.0
        %460 = vmatprep.subr.mxu0 0.0
        %461 = vmatpush1.msra.mxu0 0.0
        %462 = vmatprep.subr.mxu0 0.0
        %463 = vmatpush1.msra.mxu0 0.0
        %464 = vmatprep.subr.mxu0 0.0
        %465 = vmatpush1.msra.mxu0 0.0
        %466 = vmatprep.subr.mxu0 0.0
        %467 = vmatpush1.msra.mxu0 0.0
        %468 = vmatprep.subr.mxu0 0.0
        %469 = vmatpush1.msra.mxu0 0.0
        %470 = vmatprep.subr.mxu0 0.0
        %471 = vmatpush1.msra.mxu0 0.0
        %472 = vmatprep.mubr.f32.mxu0 0.0
        %473 = vmatmul.mubr.f32.gmra.mrb[0].mxu0 %v363
        %v474 = vpop.f32.mrb[0].mxu0
        %v475 = vadd.f32 %v401, %v474
        %v476 = vpop.f32.mrb[0].mxu0
        %v477 = vadd.f32 %v405, %v476
        %478 = vdwg.mxu0
        %v479 = vmax.f32 %v475, 0.0
        %v480 = vmax.f32 %v477, 0.0
        %v481 = vld [vmem:[%s3] sm:$0xff]
        %v482 = vld [vmem:[%s3 + $0x8] sm:$0xff]
        %v483 = vld [vmem:[%s3 + $0x10] sm:$0xff]
        %v484 = vld [vmem:[%s3 + $0x18] sm:$0xff]
        %v485 = vld [vmem:[%s3 + $0x20] sm:$0xff]
        %v486 = vld [vmem:[%s3 + $0x28] sm:$0xff]
        %v487 = vld [vmem:[%s3 + $0x30] sm:$0xff]
        %v488 = vld [vmem:[%s3 + $0x38] sm:$0xff]
        %v489 = vld [vmem:[%s3 + $0x40] sm:$0xff]
        %v490 = vld [vmem:[%s3 + $0x48] sm:$0xff]
        %v491 = vld [vmem:[%s3 + $0x50] sm:$0xff]
        %v492 = vld [vmem:[%s3 + $0x58] sm:$0xff]
        %v493 = vld [vmem:[%s3 + $0x60] sm:$0xff]
        %v494 = vld [vmem:[%s3 + $0x68] sm:$0xff]
        %v495 = vld [vmem:[%s3 + $0x70] sm:$0xff]
        %v496 = vld [vmem:[%s3 + $0x78] sm:$0xff]
        %v497 = vld [vmem:[%s3 + $0x80] sm:$0xff]
        %v498 = vld [vmem:[%s3 + $0x88] sm:$0xff]
        %v499 = vld [vmem:[%s3 + $0x90] sm:$0xff]
        %v500 = vld [vmem:[%s3 + $0x98] sm:$0xff]
        %v501 = vld [vmem:[%s3 + $0xa0] sm:$0xff]
        %v502 = vld [vmem:[%s3 + $0xa8] sm:$0xff]
        %v503 = vld [vmem:[%s3 + $0xb0] sm:$0xff]
        %v504 = vld [vmem:[%s3 + $0xb8] sm:$0xff]
        %v505 = vld [vmem:[%s3 + $0xc0] sm:$0xff]
        %v506 = vld [vmem:[%s3 + $0xc8] sm:$0xff]
        %v507 = vld [vmem:[%s3 + $0xd0] sm:$0xff]
        %v508 = vld [vmem:[%s3 + $0xd8] sm:$0xff]
        %v509 = vld [vmem:[%s3 + $0xe0] sm:$0xff]
        %v510 = vld [vmem:[%s3 + $0xe8] sm:$0xff]
        %v511 = vld [vmem:[%s3 + $0xf0] sm:$0xff]
        %v512 = vld [vmem:[%s3 + $0xf8] sm:$0xff]
        %v513 = vld [vmem:[%s4] sm:$0x1]
        %v515 = vlaneseq
        %v516 = vshrl.u32 %v515, 7
        %v517 = vsub.s32 0, %v516
        %v518 = vrot.slane %v513, %v517
        %520 = vmatprep.subr.mxu0 0.0
        %521 = vmatpush1.msra.mxu0 %v481
        %522 = vmatprep.subr.mxu0 0.0
        %523 = vmatpush1.msra.mxu0 %v482
        %524 = vmatprep.subr.mxu0 0.0
        %525 = vmatpush1.msra.mxu0 %v483
        %526 = vmatprep.subr.mxu0 0.0
        %527 = vmatpush1.msra.mxu0 %v484
        %528 = vmatprep.subr.mxu0 0.0
        %529 = vmatpush1.msra.mxu0 %v485
        %530 = vmatprep.subr.mxu0 0.0
        %531 = vmatpush1.msra.mxu0 %v486
        %532 = vmatprep.subr.mxu0 0.0
        %533 = vmatpush1.msra.mxu0 %v487
        %534 = vmatprep.subr.mxu0 0.0
        %535 = vmatpush1.msra.mxu0 %v488
        %536 = vmatprep.subr.mxu0 0.0
        %537 = vmatpush1.msra.mxu0 %v489
        %538 = vmatprep.subr.mxu0 0.0
        %539 = vmatpush1.msra.mxu0 %v490
        %540 = vmatprep.subr.mxu0 0.0
        %541 = vmatpush1.msra.mxu0 %v491
        %542 = vmatprep.subr.mxu0 0.0
        %543 = vmatpush1.msra.mxu0 %v492
        %544 = vmatprep.subr.mxu0 0.0
        %545 = vmatpush1.msra.mxu0 %v493
        %546 = vmatprep.subr.mxu0 0.0
        %547 = vmatpush1.msra.mxu0 %v494
        %548 = vmatprep.subr.mxu0 0.0
        %549 = vmatpush1.msra.mxu0 %v495
        %550 = vmatprep.subr.mxu0 0.0
        %551 = vmatpush1.msra.mxu0 %v496
        %552 = vmatprep.subr.mxu0 0.0
        %553 = vmatpush1.msra.mxu0 %v497
        %554 = vmatprep.subr.mxu0 0.0
        %555 = vmatpush1.msra.mxu0 %v498
        %556 = vmatprep.subr.mxu0 0.0
        %557 = vmatpush1.msra.mxu0 %v499
        %558 = vmatprep.subr.mxu0 0.0
        %559 = vmatpush1.msra.mxu0 %v500
        %560 = vmatprep.subr.mxu0 0.0
        %561 = vmatpush1.msra.mxu0 %v501
        %562 = vmatprep.subr.mxu0 0.0
        %563 = vmatpush1.msra.mxu0 %v502
        %564 = vmatprep.subr.mxu0 0.0
        %565 = vmatpush1.msra.mxu0 %v503
        %566 = vmatprep.subr.mxu0 0.0
        %567 = vmatpush1.msra.mxu0 %v504
        %568 = vmatprep.subr.mxu0 0.0
        %569 = vmatpush1.msra.mxu0 %v505
        %570 = vmatprep.subr.mxu0 0.0
        %571 = vmatpush1.msra.mxu0 %v506
        %572 = vmatprep.subr.mxu0 0.0
        %573 = vmatpush1.msra.mxu0 %v507
        %574 = vmatprep.subr.mxu0 0.0
        %575 = vmatpush1.msra.mxu0 %v508
        %576 = vmatprep.subr.mxu0 0.0
        %577 = vmatpush1.msra.mxu0 %v509
        %578 = vmatprep.subr.mxu0 0.0
        %579 = vmatpush1.msra.mxu0 %v510
        %580 = vmatprep.subr.mxu0 0.0
        %581 = vmatpush1.msra.mxu0 %v511
        %582 = vmatprep.subr.mxu0 0.0
        %583 = vmatpush1.msra.mxu0 %v512
        %584 = vmatprep.mubr.f32.mxu0 %v480
        %585 = vmatmul.mubr.f32.gmra.mrb[0].mxu0 %v479
        %v586 = vpop.f32.mrb[0].mxu0
        %v587 = vadd.f32 %v518, %v586
        %v588 = vpop.f32.mrb[0].mxu0
        %589 = vdwg.mxu0
        %v590 = vld [vmem:[%s5] sm:$0xff]
        %v591 = vld [vmem:[%s5 + $0x8] sm:$0xff]
        %v592 = vld [vmem:[%s5 + $0x10] sm:$0xff]
        %v593 = vld [vmem:[%s5 + $0x18] sm:$0xff]
        %v594 = vld [vmem:[%s5 + $0x20] sm:$0xff]
        %v595 = vld [vmem:[%s5 + $0x28] sm:$0xff]
        %v596 = vld [vmem:[%s5 + $0x30] sm:$0xff]
        %v597 = vld [vmem:[%s5 + $0x38] sm:$0xff]
        %v598 = vld [vmem:[%s5 + $0x40] sm:$0xff]
        %v599 = vld [vmem:[%s5 + $0x48] sm:$0xff]
        %v600 = vld [vmem:[%s5 + $0x50] sm:$0xff]
        %v601 = vld [vmem:[%s5 + $0x58] sm:$0xff]
        %v602 = vld [vmem:[%s5 + $0x60] sm:$0xff]
        %v603 = vld [vmem:[%s5 + $0x68] sm:$0xff]
        %v604 = vld [vmem:[%s5 + $0x70] sm:$0xff]
        %v605 = vld [vmem:[%s5 + $0x78] sm:$0xff]
        %v606 = vld [vmem:[%s6] sm:$0x3]
        %v608 = vlaneseq
        %v609 = vshrl.u32 %v608, 7
        %v610 = vsub.s32 0, %v609
        %v611 = vrot.slane %v606, %v610
        %v612 = vlaneseq
        %v613 = vshrl.u32 %v612, 7
        %v614 = vsub.s32 1, %v613
        %v615 = vrot.slane %v606, %v614
        %vm618 = vcmask 523264
        %v620 = vsel %vm618, %v587, 0
        %622 = vmatprep.subr.mxu0 %v591
        %623 = vmatpush1.msra.mxu0 %v590
        %624 = vmatprep.subr.mxu0 %v593
        %625 = vmatpush1.msra.mxu0 %v592
        %626 = vmatprep.subr.mxu0 %v595
        %627 = vmatpush1.msra.mxu0 %v594
        %628 = vmatprep.subr.mxu0 %v597
        %629 = vmatpush1.msra.mxu0 %v596
        %630 = vmatprep.subr.mxu0 %v599
        %631 = vmatpush1.msra.mxu0 %v598
        %632 = vmatprep.subr.mxu0 %v601
        %633 = vmatpush1.msra.mxu0 %v600
        %634 = vmatprep.subr.mxu0 %v603
        %635 = vmatpush1.msra.mxu0 %v602
        %636 = vmatprep.subr.mxu0 %v605
        %637 = vmatpush1.msra.mxu0 %v604
        %638 = vmatprep.subr.mxu0 0.0
        %639 = vmatpush1.msra.mxu0 0.0
        %640 = vmatprep.subr.mxu0 0.0
        %641 = vmatpush1.msra.mxu0 0.0
        %642 = vmatprep.subr.mxu0 0.0
        %643 = vmatpush1.msra.mxu0 0.0
        %644 = vmatprep.subr.mxu0 0.0
        %645 = vmatpush1.msra.mxu0 0.0
        %646 = vmatprep.subr.mxu0 0.0
        %647 = vmatpush1.msra.mxu0 0.0
        %648 = vmatprep.subr.mxu0 0.0
        %649 = vmatpush1.msra.mxu0 0.0
        %650 = vmatprep.subr.mxu0 0.0
        %651 = vmatpush1.msra.mxu0 0.0
        %652 = vmatprep.subr.mxu0 0.0
        %653 = vmatpush1.msra.mxu0 0.0
        %654 = vmatprep.subr.mxu0 0.0
        %655 = vmatpush1.msra.mxu0 0.0
        %656 = vmatprep.subr.mxu0 0.0
        %657 = vmatpush1.msra.mxu0 0.0
        %658 = vmatprep.subr.mxu0 0.0
        %659 = vmatpush1.msra.mxu0 0.0
        %660 = vmatprep.subr.mxu0 0.0
        %661 = vmatpush1.msra.mxu0 0.0
        %662 = vmatprep.subr.mxu0 0.0
        %663 = vmatpush1.msra.mxu0 0.0
        %664 = vmatprep.subr.mxu0 0.0
        %665 = vmatpush1.msra.mxu0 0.0
        %666 = vmatprep.subr.mxu0 0.0
        %667 = vmatpush1.msra.mxu0 0.0
        %668 = vmatprep.subr.mxu0 0.0
        %669 = vmatpush1.msra.mxu0 0.0
        %670 = vmatprep.subr.mxu0 0.0
        %671 = vmatpush1.msra.mxu0 0.0
        %672 = vmatprep.subr.mxu0 0.0
        %673 = vmatpush1.msra.mxu0 0.0
        %674 = vmatprep.subr.mxu0 0.0
        %675 = vmatpush1.msra.mxu0 0.0
        %676 = vmatprep.subr.mxu0 0.0
        %677 = vmatpush1.msra.mxu0 0.0
        %678 = vmatprep.subr.mxu0 0.0
        %679 = vmatpush1.msra.mxu0 0.0
        %680 = vmatprep.subr.mxu0 0.0
        %681 = vmatpush1.msra.mxu0 0.0
        %682 = vmatprep.subr.mxu0 0.0
        %683 = vmatpush1.msra.mxu0 0.0
        %684 = vmatprep.subr.mxu0 0.0
        %685 = vmatpush1.msra.mxu0 0.0
        %686 = vmatprep.mubr.f32.mxu0 0.0
        %687 = vmatmul.mubr.f32.gmra.mrb[0].mxu0 %v620
        %v688 = vpop.f32.mrb[0].mxu0
        %v689 = vadd.f32 %v611, %v688
        %v690 = vpop.f32.mrb[0].mxu0
        %v691 = vadd.f32 %v615, %v690
        %692 = vdwg.mxu0
        %v693 = vmax.f32 %v689, 0.0
        %v694 = vmax.f32 %v691, 0.0
        %v695 = vld [vmem:[#allocation5] sm:$0xff]
        %v696 = vld [vmem:[#allocation5 + $0x8] sm:$0xff]
        %v697 = vld [vmem:[#allocation5 + $0x10] sm:$0xff]
        %v698 = vld [vmem:[#allocation5 + $0x18] sm:$0xff]
        %v699 = vld [vmem:[#allocation5 + $0x20] sm:$0xff]
        %v700 = vld [vmem:[#allocation5 + $0x28] sm:$0xff]
        %v701 = vld [vmem:[#allocation5 + $0x30] sm:$0xff]
        %v702 = vld [vmem:[#allocation5 + $0x38] sm:$0xff]
        %v703 = vld [vmem:[#allocation5 + $0x40] sm:$0xff]
        %v704 = vld [vmem:[#allocation5 + $0x48] sm:$0xff]
        %v705 = vld [vmem:[#allocation5 + $0x50] sm:$0xff]
        %v706 = vld [vmem:[#allocation5 + $0x58] sm:$0xff]
        %v707 = vld [vmem:[#allocation5 + $0x60] sm:$0xff]
        %v708 = vld [vmem:[#allocation5 + $0x68] sm:$0xff]
        %v709 = vld [vmem:[#allocation5 + $0x70] sm:$0xff]
        %v710 = vld [vmem:[#allocation5 + $0x78] sm:$0xff]
        %v711 = vld [vmem:[#allocation5 + $0x80] sm:$0xff]
        %v712 = vld [vmem:[#allocation5 + $0x88] sm:$0xff]
        %v713 = vld [vmem:[#allocation5 + $0x90] sm:$0xff]
        %v714 = vld [vmem:[#allocation5 + $0x98] sm:$0xff]
        %v715 = vld [vmem:[#allocation5 + $0xa0] sm:$0xff]
        %v716 = vld [vmem:[#allocation5 + $0xa8] sm:$0xff]
        %v717 = vld [vmem:[#allocation5 + $0xb0] sm:$0xff]
        %v718 = vld [vmem:[#allocation5 + $0xb8] sm:$0xff]
        %v719 = vld [vmem:[#allocation5 + $0xc0] sm:$0xff]
        %v720 = vld [vmem:[#allocation5 + $0xc8] sm:$0xff]
        %v721 = vld [vmem:[#allocation5 + $0xd0] sm:$0xff]
        %v722 = vld [vmem:[#allocation5 + $0xd8] sm:$0xff]
        %v723 = vld [vmem:[#allocation5 + $0xe0] sm:$0xff]
        %v724 = vld [vmem:[#allocation5 + $0xe8] sm:$0xff]
        %v725 = vld [vmem:[#allocation5 + $0xf0] sm:$0xff]
        %v726 = vld [vmem:[#allocation5 + $0xf8] sm:$0xff]
        %v727 = vld [vmem:[%s8] sm:$0x1]
        %v729 = vlaneseq
        %v730 = vshrl.u32 %v729, 7
        %v731 = vsub.s32 0, %v730
        %v732 = vrot.slane %v727, %v731
        %734 = vmatprep.subr.mxu0 0.0
        %735 = vmatpush1.msra.mxu0 %v695
        %736 = vmatprep.subr.mxu0 0.0
        %737 = vmatpush1.msra.mxu0 %v696
        %738 = vmatprep.subr.mxu0 0.0
        %739 = vmatpush1.msra.mxu0 %v697
        %740 = vmatprep.subr.mxu0 0.0
        %741 = vmatpush1.msra.mxu0 %v698
        %742 = vmatprep.subr.mxu0 0.0
        %743 = vmatpush1.msra.mxu0 %v699
        %744 = vmatprep.subr.mxu0 0.0
        %745 = vmatpush1.msra.mxu0 %v700
        %746 = vmatprep.subr.mxu0 0.0
        %747 = vmatpush1.msra.mxu0 %v701
        %748 = vmatprep.subr.mxu0 0.0
        %749 = vmatpush1.msra.mxu0 %v702
        %750 = vmatprep.subr.mxu0 0.0
        %751 = vmatpush1.msra.mxu0 %v703
        %752 = vmatprep.subr.mxu0 0.0
        %753 = vmatpush1.msra.mxu0 %v704
        %754 = vmatprep.subr.mxu0 0.0
        %755 = vmatpush1.msra.mxu0 %v705
        %756 = vmatprep.subr.mxu0 0.0
        %757 = vmatpush1.msra.mxu0 %v706
        %758 = vmatprep.subr.mxu0 0.0
        %759 = vmatpush1.msra.mxu0 %v707
        %760 = vmatprep.subr.mxu0 0.0
        %761 = vmatpush1.msra.mxu0 %v708
        %762 = vmatprep.subr.mxu0 0.0
        %763 = vmatpush1.msra.mxu0 %v709
        %764 = vmatprep.subr.mxu0 0.0
        %765 = vmatpush1.msra.mxu0 %v710
        %766 = vmatprep.subr.mxu0 0.0
        %767 = vmatpush1.msra.mxu0 %v711
        %768 = vmatprep.subr.mxu0 0.0
        %769 = vmatpush1.msra.mxu0 %v712
        %770 = vmatprep.subr.mxu0 0.0
        %771 = vmatpush1.msra.mxu0 %v713
        %772 = vmatprep.subr.mxu0 0.0
        %773 = vmatpush1.msra.mxu0 %v714
        %774 = vmatprep.subr.mxu0 0.0
        %775 = vmatpush1.msra.mxu0 %v715
        %776 = vmatprep.subr.mxu0 0.0
        %777 = vmatpush1.msra.mxu0 %v716
        %778 = vmatprep.subr.mxu0 0.0
        %779 = vmatpush1.msra.mxu0 %v717
        %780 = vmatprep.subr.mxu0 0.0
        %781 = vmatpush1.msra.mxu0 %v718
        %782 = vmatprep.subr.mxu0 0.0
        %783 = vmatpush1.msra.mxu0 %v719
        %784 = vmatprep.subr.mxu0 0.0
        %785 = vmatpush1.msra.mxu0 %v720
        %786 = vmatprep.subr.mxu0 0.0
        %787 = vmatpush1.msra.mxu0 %v721
        %788 = vmatprep.subr.mxu0 0.0
        %789 = vmatpush1.msra.mxu0 %v722
        %790 = vmatprep.subr.mxu0 0.0
        %791 = vmatpush1.msra.mxu0 %v723
        %792 = vmatprep.subr.mxu0 0.0
        %793 = vmatpush1.msra.mxu0 %v724
        %794 = vmatprep.subr.mxu0 0.0
        %795 = vmatpush1.msra.mxu0 %v725
        %796 = vmatprep.subr.mxu0 0.0
        %797 = vmatpush1.msra.mxu0 %v726
        %798 = vmatprep.mubr.f32.mxu0 %v694
        %799 = vmatmul.mubr.f32.gmra.mrb[0].mxu0 %v693
        %v800 = vpop.f32.mrb[0].mxu0
        %v801 = vadd.f32 %v732, %v800
        %v802 = vpop.f32.mrb[0].mxu0
        %803 = vdwg.mxu0
        %804 = vst [vmem:[%s362] sm:$0xff] %v801
        %s805 = sand.u32 %s229, 1
        %s806 = scalar_lea.sflag [#allocation4], %s805
        %s807 = sand.u32 %s229, 1
        %s808 = smul.addr %s807, 8
        %s809 = scalar_lea.vmem [#allocation7], %s808
        // Predicated region
        $region65: #{tpu_custom_call.1} parent=55 // pred_check
          %p810 = pneg %p239
        $region66: #{tpu_custom_call.1} parent=55 // pred_check_branch
          %812 = sbr.rel (%p810) target = $region68
        $region67: #{tpu_custom_call.1} parent=55 // pred_region
          %s814 = ssub.s32 128, 128
          %815 = vsyncadd %s806, %s814
          %s816 = smul.addr %s27, 128
          %s817 = scalar_lea.hbm %s9, %s816
          %s819 = sshll.u32 %s809, 4
          %s820 = int_to_ptr.vmem [resolvable:$true] %s819
          %822 = dma.vmem_to_hbm [thread:$0]  %s820, 128, %s817, %s806
        $region68: #{tpu_custom_call.1} parent=55 // pred_fallthru
          _
      $region56: #{tpu_custom_call.1} parent=5 // pred_fallthru
        _
      %p823 = scmp.le.s32.totalorder 2, %s22
      // Predicated region
      $region69: #{tpu_custom_call.1} parent=5 // pred_check
        %p824 = pneg %p823
      $region70: #{tpu_custom_call.1} parent=5 // pred_check_branch
        %826 = sbr.rel (%p824) target = $region72
      $region71: #{tpu_custom_call.1} parent=5 // pred_region
        %s827 = ssub.s32 %s22, 2
        // Predicated region
        $region73: #{tpu_custom_call.1} parent=71 // pred_check
          %p828 = pneg %p245
        $region74: #{tpu_custom_call.1} parent=71 // pred_check_branch
          %830 = sbr.rel (%p828) target = $region76
        $region75: #{tpu_custom_call.1} parent=71 // pred_region
          %s831 = sand.u32 %s230, 1
          %s832 = scalar_lea.sflag [#allocation4], %s831
          %s833 = sand.u32 %s230, 1
          %s834 = smul.addr %s833, 8
          %s835 = scalar_lea.vmem [#allocation7], %s834
          %836 = dma.done %s832, 128
        $region76: #{tpu_custom_call.1} parent=71 // pred_fallthru
          _
      $region72: #{tpu_custom_call.1} parent=5 // pred_fallthru
        _
    $region6: #{tpu_custom_call.1} parent=1 // loop_footer
      %s26 = sadd.s32 1, %s22
    $region7: #{tpu_custom_call.1} parent=1 // loop_footer_branch
      %21 = sbr.rel target = $region3
    $region8: #{tpu_custom_call.1} parent=1 // loop_exit
      _
    %837 = vsyncpa [#allocation3], 1
    %s838 = scalar_lea.sflag [#allocation3], 1
    %839 = vsyncpa %s838, 1
    %840 = vsyncpa [#allocation6], 1
    %841 = vsyncpa [#allocation4], 1
    %s842 = scalar_lea.sflag [#allocation4], 1
    %843 = vsyncpa %s842, 1

</llo_original>
